<compile_context>
chip_gen: v5e
topology: v5e:2x2
jax: 0.10.0
libtpu: 0.0.40
codegen_flags: <defaults>
</compile_context>

<pallas_src>
import functools

import jax
import jax.numpy as jnp
from jax.experimental import pallas as pl
from jax.experimental.pallas import tpu as pltpu


def _round_up(x, m):
    return ((x + m - 1) // m) * m


# ----------------------------------------------------------------------------
# Fused BAN forward kernel (one grid step == one batch tile, all in VMEM).
# ----------------------------------------------------------------------------
def _ban_fused_kernel(
    # per-batch tensors (bf16)
    wemb_ref, waemb_ref, v_ref,
    # token encoders
    qe_w_ref, qe_b_ref, ae_w_ref, ae_b_ref,
    # concatenated v-side projections: [v_att | va_att | b_net(g..) | tva_net(g..)]
    wv_cat_ref, bv_cat_ref,
    # attention question / answer side projections
    vatt_wq_ref, vatt_bq_ref, vaatt_wq_ref, vaatt_bq_ref,
    # per-glimpse stacked weights
    bnet_wq_ref, bnet_bq_ref, tva_wq_ref, tva_bq_ref,
    qprj_w_ref, qprj_b_ref, aprj_w_ref, aprj_b_ref,
    # classifier (w2/b2 column-padded to a lane multiple)
    c_w1_ref, c_b1_ref, c_w2_ref, c_b2_ref,
    # outputs
    cls_ref, att_ref,
):
    f32 = jnp.float32
    bf16 = jnp.bfloat16
    TB, O, Vd = v_ref.shape
    _, Sq, E = wemb_ref.shape
    _, Sa, _ = waemb_ref.shape
    H = qe_w_ref.shape[1]
    GH = vatt_wq_ref.shape[1]
    G = GH // H
    ATT_W = att_ref.shape[1]          # lane-padded attention slab width
    ATT = G * O * Sq                  # real attention width

    # -- 1. token encoders: Linear + tanh (bf16 operands -> f32 accumulate).
    # TODO(synk): real BAN QuestionEmbedding is a GRU; recurrence not ported.
    q_emb = jnp.tanh(
        jnp.dot(wemb_ref[...].reshape(TB * Sq, E), qe_w_ref[...],
                preferred_element_type=f32) + qe_b_ref[...])              # [TB*Sq, H] f32
    a_emb = jnp.tanh(
        jnp.dot(waemb_ref[...].reshape(TB * Sa, E), ae_w_ref[...],
                preferred_element_type=f32) + ae_b_ref[...])              # [TB*Sa, H] f32

    # -- 2. every v-side projection shares ONE MXU call (bf16 x bf16 -> f32).
    vproj = jnp.dot(v_ref[...].reshape(TB * O, Vd), wv_cat_ref[...],
                    preferred_element_type=f32) + bv_cat_ref[...]         # [TB*O, 4*G*H]
    vp_q = vproj[:, 0 * GH:1 * GH].astype(bf16).reshape(TB, O, GH)        # v_att (no act)
    vp_a = vproj[:, 1 * GH:2 * GH].astype(bf16).reshape(TB, O, GH)        # va_att (no act)
    vP_b = jnp.maximum(vproj[:, 2 * GH:3 * GH], 0.0).reshape(TB, O, GH)   # b_net (relu)
    vP_t = jnp.maximum(vproj[:, 3 * GH:4 * GH], 0.0).reshape(TB, O, GH)   # tva_net (relu)

    # -- 3. bilinear attention of the PRE-loop embeddings, per glimpse.
    #    h_bias is uniform over the flattened (O,S) softmax -> cancels -> dropped.
    qp = (jnp.dot(q_emb.astype(bf16), vatt_wq_ref[...], preferred_element_type=f32)
          + vatt_bq_ref[...]).astype(bf16).reshape(TB, Sq, GH)
    ap = (jnp.dot(a_emb.astype(bf16), vaatt_wq_ref[...], preferred_element_type=f32)
          + vaatt_bq_ref[...]).astype(bf16).reshape(TB, Sa, GH)

    att_q, att_a, att_parts = [], [], []
    for g in range(G):
        sl = slice(g * H, (g + 1) * H)
        s_q = jnp.einsum("boh,bsh->bos", vp_q[:, :, sl], qp[:, :, sl],
                         preferred_element_type=f32)                      # [TB, O, Sq]
        s_a = jnp.einsum("boh,bsh->bos", vp_a[:, :, sl], ap[:, :, sl],
                         preferred_element_type=f32)                      # [TB, O, Sa]

        # softmax over the flattened (O, S) grid; divide goes to the EUP slot.
        pf = s_q.reshape(TB, O * Sq)
        pf = jnp.exp(pf - jnp.max(pf, axis=-1, keepdims=True))
        pf = pf * pl.reciprocal(jnp.sum(pf, axis=-1, keepdims=True), approx=True)
        att_parts.append(pf)
        att_q.append(pf.reshape(TB, O, Sq))

        af = s_a.reshape(TB, O * Sa)
        af = jnp.exp(af - jnp.max(af, axis=-1, keepdims=True))
        af = af * pl.reciprocal(jnp.sum(af, axis=-1, keepdims=True), approx=True)
        att_a.append(af.reshape(TB, O, Sa))

    # single lane-dense, unmasked store of the whole attention map
    slab = jnp.concatenate(att_parts, axis=-1)                            # [TB, G*O*Sq]
    if ATT_W > ATT:
        slab = jnp.concatenate([slab, jnp.zeros((TB, ATT_W - ATT), f32)], axis=-1)
    att_ref[...] = slab

    # -- 4. sequential glimpse loop (q_emb / a_emb are the carried streams).
    # TODO(synk): at production G (=8) convert to lax.fori_loop (dynamic ref[g]
    # indexing) to bound live ranges / vreg pressure.
    for g in range(G):
        sl = slice(g * H, (g + 1) * H)
        qP = jnp.maximum(
            jnp.dot(q_emb.astype(bf16), bnet_wq_ref[g], preferred_element_type=f32)
            + bnet_bq_ref[g], 0.0).reshape(TB, Sq, H)
        aP = jnp.maximum(
            jnp.dot(a_emb.astype(bf16), tva_wq_ref[g], preferred_element_type=f32)
            + tva_bq_ref[g], 0.0).reshape(TB, Sa, H)

        # BCNet.forward_with_weights: out[b,h] = sum_{o,s} vP[b,o,h]*att[b,o,s]*qP[b,s,h]
        u_q = jnp.einsum("bos,bsh->boh", att_q[g].astype(bf16), qP.astype(bf16),
                         preferred_element_type=f32)
        b_emb = jnp.sum(vP_b[:, :, sl] * u_q, axis=1)                     # [TB, H]
        u_a = jnp.einsum("bos,bsh->boh", att_a[g].astype(bf16), aP.astype(bf16),
                         preferred_element_type=f32)
        va_emb = jnp.sum(vP_t[:, :, sl] * u_a, axis=1)                    # [TB, H]

        # counter is None -> counter / c_prj branch inactive
        q_res = (jnp.dot(b_emb.astype(bf16), qprj_w_ref[g],
                         preferred_element_type=f32) + qprj_b_ref[g])
        a_res = (jnp.dot(va_emb.astype(bf16), aprj_w_ref[g],
                         preferred_element_type=f32) + aprj_b_ref[g])
        q_emb = (q_emb.reshape(TB, Sq, H) + q_res[:, None, :]).reshape(TB * Sq, H)
        a_emb = (a_emb.reshape(TB, Sa, H) + a_res[:, None, :]).reshape(TB * Sa, H)

    # -- 5. joint representation + classifier (Linear -> ReLU -> Linear), padded N.
    joint = (jnp.sum(q_emb.reshape(TB, Sq, H), axis=1)
             + jnp.sum(a_emb.reshape(TB, Sa, H), axis=1))                 # [TB, H]
    h1 = jnp.maximum(
        jnp.dot(joint.astype(bf16), c_w1_ref[...], preferred_element_type=f32)
        + c_b1_ref[...], 0.0)
    cls_ref[...] = (jnp.dot(h1.astype(bf16), c_w2_ref[...], preferred_element_type=f32)
                    + c_b2_ref[...]).astype(cls_ref.dtype)


# ----------------------------------------------------------------------------
# BanModel.forward wrapper: weight packing + single pallas_call.
# ----------------------------------------------------------------------------
def ban_forward(params, v, b, q, ans, *, glimpse, batch_tile=None):
    """v:[B,O,obj_dim], b:[B,O,b_dim], q:[B,Sq] ids, ans:[B,Sa] ids -> (logits, att)."""
    del b  # boxes only feed the counter branch; counter is None in this config
    G = int(glimpse)
    B, O, Vd = v.shape
    Sq, Sa = q.shape[1], ans.shape[1]
    E = params["w_emb"].shape[1]
    H = params["q_enc"]["w"].shape[1]
    A = params["classifier"]["w2"].shape[1]
    GH = G * H
    bf16, f32 = jnp.bfloat16, jnp.float32

    # padded output widths -> full MXU N tile + unmasked lane-dense stores
    A_pad = _round_up(A, 128)
    ATT = G * O * Sq
    ATT_W = _round_up(ATT, 128)

    # batch tiling: >=2 grid steps when the batch allows so v7x's two
    # TensorCores both get work via dimension_semantics=("parallel",).
    if batch_tile is None:
        TB = B // 2 if (B % 2 == 0 and (B // 2) % 8 == 0) else B
    else:
        TB = int(batch_tile)
    assert B % TB == 0 and (TB == B or TB % 8 == 0), "bad batch tile"
    nb = B // TB

    # word / answer-word embeddings (gather glue, stays in XLA), bf16 operands
    w_emb = jnp.take(params["w_emb"].astype(bf16), q, axis=0)        # [B, Sq, E]
    wa_emb = jnp.take(params["wa_emb"].astype(bf16), ans, axis=0)    # [B, Sa, E]
    v_b = v.astype(bf16)

    # ---- weight packing: concat matmuls that share the same input ----
    bnet, tva = params["b_net"], params["tva_net"]
    assert len(bnet) == G and len(tva) == G
    wv_cat = jnp.concatenate(
        [params["v_att"]["wv"], params["va_att"]["wv"]]
        + [bnet[g]["wv"] for g in range(G)] + [tva[g]["wv"] for g in range(G)],
        axis=1).astype(bf16)                                          # [Vd, 4*G*H]
    bv_cat = jnp.concatenate(
        [params["v_att"]["bv"], params["va_att"]["bv"]]
        + [bnet[g]["bv"] for g in range(G)] + [tva[g]["bv"] for g in range(G)],
        axis=0).reshape(1, 4 * GH).astype(f32)

    stack_w = lambda mods, k: jnp.stack([m[k] for m in mods], axis=0).astype(bf16)
    stack_b = lambda mods, k: (jnp.stack([m[k] for m in mods], axis=0)
                               .reshape(G, 1, H).astype(f32))
    bnet_wq, bnet_bq = stack_w(bnet, "wq"), stack_b(bnet, "bq")
    tva_wq, tva_bq = stack_w(tva, "wq"), stack_b(tva, "bq")
    qprj_w, qprj_b = stack_w(params["q_prj"], "w"), stack_b(params["q_prj"], "b")
    aprj_w, aprj_b = stack_w(params["a_prj"], "w"), stack_b(params["a_prj"], "b")

    cls = params["classifier"]
    w2, b2 = cls["w2"], cls["b2"]
    if A_pad > A:
        w2 = jnp.concatenate([w2, jnp.zeros((2 * H, A_pad - A), w2.dtype)], axis=1)
        b2 = jnp.concatenate([b2, jnp.zeros((A_pad - A,), b2.dtype)], axis=0)

    def _rep(shape):
        # TODO(synk): at production sizes add pipeline_mode=pl.Buffered(1) on
        # these constant-index weight blocks to halve their VMEM residency.
        n = len(shape)
        return pl.BlockSpec(shape, lambda i: (0,) * n)

    in_specs = [
        pl.BlockSpec((TB, Sq, E), lambda i: (i, 0, 0)),
        pl.BlockSpec((TB, Sa, E), lambda i: (i, 0, 0)),
        pl.BlockSpec((TB, O, Vd), lambda i: (i, 0, 0)),
        _rep((E, H)), _rep((1, H)), _rep((E, H)), _rep((1, H)),
        _rep((Vd, 4 * GH)), _rep((1, 4 * GH)),
        _rep((H, GH)), _rep((1, GH)), _rep((H, GH)), _rep((1, GH)),
        _rep((G, H, H)), _rep((G, 1, H)), _rep((G, H, H)), _rep((G, 1, H)),
        _rep((G, H, H)), _rep((G, 1, H)), _rep((G, H, H)), _rep((G, 1, H)),
        _rep((H, 2 * H)), _rep((1, 2 * H)), _rep((2 * H, A_pad)), _rep((1, A_pad)),
    ]
    out_specs = (
        pl.BlockSpec((TB, A_pad), lambda i: (i, 0)),
        pl.BlockSpec((TB, ATT_W), lambda i: (i, 0)),     # lane-dense att slab
    )
    out_shape = (
        jax.ShapeDtypeStruct((B, A_pad), jnp.float32),
        jax.ShapeDtypeStruct((B, ATT_W), jnp.float32),
    )

    cls_pad, att_flat = pl.pallas_call(
        _ban_fused_kernel,
        out_shape=out_shape,
        grid=(nb,),
        in_specs=in_specs,
        out_specs=out_specs,
        compiler_params=pltpu.CompilerParams(
            dimension_semantics=("parallel",),           # batch tiles independent
            vmem_limit_bytes=32 * 1024 * 1024),
    )(
        w_emb, wa_emb, v_b,
        params["q_enc"]["w"].astype(bf16), params["q_enc"]["b"].reshape(1, H).astype(f32),
        params["a_enc"]["w"].astype(bf16), params["a_enc"]["b"].reshape(1, H).astype(f32),
        wv_cat, bv_cat,
        params["v_att"]["wq"].astype(bf16), params["v_att"]["bq"].reshape(1, GH).astype(f32),
        params["va_att"]["wq"].astype(bf16), params["va_att"]["bq"].reshape(1, GH).astype(f32),
        bnet_wq, bnet_bq, tva_wq, tva_bq,
        qprj_w, qprj_b, aprj_w, aprj_b,
        cls["w1"].astype(bf16), cls["b1"].reshape(1, 2 * H).astype(f32),
        w2.astype(bf16), b2.reshape(1, A_pad).astype(f32),
    )
    logits = cls_pad[:, :A]
    att = att_flat[:, :ATT].reshape(B, G, O, Sq)
    return logits, att


# ----------------------------------------------------------------------------
# Pure-JAX f32 reference (same math, used only to validate the kernel).
# ----------------------------------------------------------------------------
def _ref_linear(x, w, b, act=None):
    y = x @ w + b
    if act == "relu":
        return jnp.maximum(y, 0.0)
    if act == "tanh":
        return jnp.tanh(y)
    return y


def ban_forward_reference(params, v, q, ans, *, glimpse):
    G = int(glimpse)
    B, O, Vd = v.shape
    H = params["q_enc"]["w"].shape[1]
    w_emb = jnp.take(params["w_emb"], q, axis=0)
    wa_emb = jnp.take(params["wa_emb"], ans, axis=0)
    q_emb = _ref_linear(w_emb, params["q_enc"]["w"], params["q_enc"]["b"], "tanh")
    a_emb = _ref_linear(wa_emb, params["a_enc"]["w"], params["a_enc"]["b"], "tanh")

    def biatt(qq, prm):
        S = qq.shape[1]
        vp = (_ref_linear(v.reshape(B * O, Vd), prm["wv"], prm["bv"])
              .reshape(B, O, G, H).transpose(0, 2, 1, 3))
        qp = (_ref_linear(qq.reshape(B * S, H), prm["wq"], prm["bq"])
              .reshape(B, S, G, H).transpose(0, 2, 1, 3))
        # h_bias is uniform over the softmax axis -> no effect on probabilities
        logits = jnp.einsum("bgoh,bgsh->bgos", vp, qp) + prm["h_bias"][None, :, None, None]
        p = jax.nn.softmax(logits.reshape(B, G, O * S), axis=-1)
        return p.reshape(B, G, O, S)

    def bcnet(qq, w_att, prm):
        vP = jnp.maximum(v @ prm["wv"] + prm["bv"], 0.0)        # [B, O, H]
        qP = jnp.maximum(qq @ prm["wq"] + prm["bq"], 0.0)       # [B, S, H]
        return jnp.einsum("boh,bos,bsh->bh", vP, w_att, qP)

    att = biatt(q_emb, params["v_att"])
    va_att = biatt(a_emb, params["va_att"])
    for g in range(G):
        b_emb = bcnet(q_emb, att[:, g], params["b_net"][g])
        va_emb = bcnet(a_emb, va_att[:, g], params["tva_net"][g])
        q_emb = q_emb + _ref_linear(b_emb, params["q_prj"][g]["w"],
                                    params["q_prj"][g]["b"])[:, None, :]
        a_emb = a_emb + _ref_linear(va_emb, params["a_prj"][g]["w"],
                                    params["a_prj"][g]["b"])[:, None, :]
    joint = q_emb.sum(1) + a_emb.sum(1)
    h1 = _ref_linear(joint, params["classifier"]["w1"], params["classifier"]["b1"], "relu")
    logits = _ref_linear(h1, params["classifier"]["w2"], params["classifier"]["b2"])
    return logits, att


# ----------------------------------------------------------------------------
# Parameter init (deterministic, synthetic — no checkpoint loading)
# ----------------------------------------------------------------------------
def _init(key, shape, scale=0.1):
    return (scale * jax.random.normal(key, shape)).astype(jnp.float32)


def init_params(key, *, Vq, Va, E, H, G, Vd, num_ans):
    ks = iter(jax.random.split(key, 64))
    p = {
        "w_emb": _init(next(ks), (Vq, E)),
        "wa_emb": _init(next(ks), (Va, E)),
        "q_enc": {"w": _init(next(ks), (E, H)), "b": jnp.zeros((H,), jnp.float32)},
        "a_enc": {"w": _init(next(ks), (E, H)), "b": jnp.zeros((H,), jnp.float32)},
        "v_att": {
            "wv": _init(next(ks), (Vd, G * H)), "bv": jnp.zeros((G * H,), jnp.float32),
            "wq": _init(next(ks), (H, G * H)), "bq": jnp.zeros((G * H,), jnp.float32),
            "h_bias": _init(next(ks), (G,)),
        },
        "va_att": {
            "wv": _init(next(ks), (Vd, G * H)), "bv": jnp.zeros((G * H,), jnp.float32),
            "wq": _init(next(ks), (H, G * H)), "bq": jnp.zeros((G * H,), jnp.float32),
            "h_bias": _init(next(ks), (G,)),
        },
        "b_net": [], "tva_net": [], "q_prj": [], "a_prj": [],
        "classifier": {
            "w1": _init(next(ks), (H, 2 * H)), "b1": jnp.zeros((2 * H,), jnp.float32),
            "w2": _init(next(ks), (2 * H, num_ans)), "b2": jnp.zeros((num_ans,), jnp.float32),
        },
    }
    for _ in range(G):
        p["b_net"].append({
            "wv": _init(next(ks), (Vd, H)), "bv": jnp.zeros((H,), jnp.float32),
            "wq": _init(next(ks), (H, H)), "bq": jnp.zeros((H,), jnp.float32)})
        p["tva_net"].append({
            "wv": _init(next(ks), (Vd, H)), "bv": jnp.zeros((H,), jnp.float32),
            "wq": _init(next(ks), (H, H)), "bq": jnp.zeros((H,), jnp.float32)})
        p["q_prj"].append({"w": _init(next(ks), (H, H)), "b": jnp.zeros((H,), jnp.float32)})
        p["a_prj"].append({"w": _init(next(ks), (H, H)), "b": jnp.zeros((H,), jnp.float32)})
    return p


# ----------------------------------------------------------------------------
if __name__ == "__main__":
    B, O, Vd, bdim = 2, 8, 32, 6      # batch, num_objs, obj_dim, b_dim
    Sq, Sa = 8, 4                     # question / answer sequence lengths
    E, H, G = 16, 32, 2               # word-emb dim, hidden dim, glimpses
    num_ans, Vq, Va = 10, 50, 30      # classifier classes, vocab sizes

    key = jax.random.PRNGKey(0)
    kp, kv, kb, kq, ka = jax.random.split(key, 5)
    params = init_params(kp, Vq=Vq, Va=Va, E=E, H=H, G=G, Vd=Vd, num_ans=num_ans)

    v = jax.random.normal(kv, (B, O, Vd), jnp.float32)
    b = jax.random.uniform(kb, (B, O, bdim), jnp.float32)
    q = jax.random.randint(kq, (B, Sq), 0, Vq, dtype=jnp.int32)
    ans = jax.random.randint(ka, (B, Sa), 0, Va, dtype=jnp.int32)

    fwd = jax.jit(functools.partial(ban_forward, glimpse=G))
    logits, att = fwd(params, v, b, q, ans)
    jax.block_until_ready((logits, att))

    assert logits.shape == (B, num_ans), logits.shape
    assert att.shape == (B, G, O, Sq), att.shape
    assert bool(jnp.all(jnp.isfinite(logits)))
    assert bool(jnp.all(jnp.isfinite(att)))
    # attention sums to ~1 over the flattened (objs x seq) grid per (batch, glimpse)
    s = jnp.sum(att.reshape(B, G, -1), axis=-1)
    assert bool(jnp.allclose(s, 1.0, atol=2e-2)), s

    # compare against the pure-JAX f32 reference (tolerance covers bf16 MXU
    # operands + approximate EUP reciprocal in the softmax)
    ref_logits, ref_att = ban_forward_reference(params, v, q, ans, glimpse=G)
    assert bool(jnp.allclose(att, ref_att, atol=1e-2, rtol=2e-2))
    assert bool(jnp.allclose(logits, ref_logits, atol=1e-2, rtol=2e-2))

    print("KERNEL_OK")
</pallas_src>

<mosaic_0001>
module attributes {stable_mosaic.version = 11 : i64} {
  func.func @_ban_fused_kernel(%arg0: i32, %arg1: memref<2x8x16xbf16, #tpu.memory_space<vmem>>, %arg2: memref<2x4x16xbf16, #tpu.memory_space<vmem>>, %arg3: memref<2x8x32xbf16, #tpu.memory_space<vmem>>, %arg4: memref<16x32xbf16, #tpu.memory_space<vmem>>, %arg5: memref<1x32xf32, #tpu.memory_space<vmem>>, %arg6: memref<16x32xbf16, #tpu.memory_space<vmem>>, %arg7: memref<1x32xf32, #tpu.memory_space<vmem>>, %arg8: memref<32x256xbf16, #tpu.memory_space<vmem>>, %arg9: memref<1x256xf32, #tpu.memory_space<vmem>>, %arg10: memref<32x64xbf16, #tpu.memory_space<vmem>>, %arg11: memref<1x64xf32, #tpu.memory_space<vmem>>, %arg12: memref<32x64xbf16, #tpu.memory_space<vmem>>, %arg13: memref<1x64xf32, #tpu.memory_space<vmem>>, %arg14: memref<2x32x32xbf16, #tpu.memory_space<vmem>>, %arg15: memref<2x1x32xf32, #tpu.memory_space<vmem>>, %arg16: memref<2x32x32xbf16, #tpu.memory_space<vmem>>, %arg17: memref<2x1x32xf32, #tpu.memory_space<vmem>>, %arg18: memref<2x32x32xbf16, #tpu.memory_space<vmem>>, %arg19: memref<2x1x32xf32, #tpu.memory_space<vmem>>, %arg20: memref<2x32x32xbf16, #tpu.memory_space<vmem>>, %arg21: memref<2x1x32xf32, #tpu.memory_space<vmem>>, %arg22: memref<32x64xbf16, #tpu.memory_space<vmem>>, %arg23: memref<1x64xf32, #tpu.memory_space<vmem>>, %arg24: memref<64x128xbf16, #tpu.memory_space<vmem>>, %arg25: memref<1x128xf32, #tpu.memory_space<vmem>>, %arg26: memref<2x128xf32, #tpu.memory_space<vmem>>, %arg27: memref<2x128xf32, #tpu.memory_space<vmem>>) attributes {dimension_semantics = [#tpu.dimension_semantics<parallel>], iteration_bounds = array<i64: 1>, scalar_prefetch = 0 : i64, scratch_operands = 0 : i64, tpu.core_type = #tpu.core_type<tc>, window_params = [{transform_indices = @transform_0, window_bounds = array<i64: 2, 8, 16>}, {transform_indices = @transform_1, window_bounds = array<i64: 2, 4, 16>}, {transform_indices = @transform_2, window_bounds = array<i64: 2, 8, 32>}, {pipeline_mode = #tpu.pipeline_mode<synchronous>, transform_indices = @transform_3, window_bounds = array<i64: 16, 32>}, {pipeline_mode = #tpu.pipeline_mode<synchronous>, transform_indices = @transform_4, window_bounds = array<i64: 1, 32>}, {pipeline_mode = #tpu.pipeline_mode<synchronous>, transform_indices = @transform_5, window_bounds = array<i64: 16, 32>}, {pipeline_mode = #tpu.pipeline_mode<synchronous>, transform_indices = @transform_6, window_bounds = array<i64: 1, 32>}, {pipeline_mode = #tpu.pipeline_mode<synchronous>, transform_indices = @transform_7, window_bounds = array<i64: 32, 256>}, {pipeline_mode = #tpu.pipeline_mode<synchronous>, transform_indices = @transform_8, window_bounds = array<i64: 1, 256>}, {pipeline_mode = #tpu.pipeline_mode<synchronous>, transform_indices = @transform_9, window_bounds = array<i64: 32, 64>}, {pipeline_mode = #tpu.pipeline_mode<synchronous>, transform_indices = @transform_10, window_bounds = array<i64: 1, 64>}, {pipeline_mode = #tpu.pipeline_mode<synchronous>, transform_indices = @transform_11, window_bounds = array<i64: 32, 64>}, {pipeline_mode = #tpu.pipeline_mode<synchronous>, transform_indices = @transform_12, window_bounds = array<i64: 1, 64>}, {pipeline_mode = #tpu.pipeline_mode<synchronous>, transform_indices = @transform_13, window_bounds = array<i64: 2, 32, 32>}, {pipeline_mode = #tpu.pipeline_mode<synchronous>, transform_indices = @transform_14, window_bounds = array<i64: 2, 1, 32>}, {pipeline_mode = #tpu.pipeline_mode<synchronous>, transform_indices = @transform_15, window_bounds = array<i64: 2, 32, 32>}, {pipeline_mode = #tpu.pipeline_mode<synchronous>, transform_indices = @transform_16, window_bounds = array<i64: 2, 1, 32>}, {pipeline_mode = #tpu.pipeline_mode<synchronous>, transform_indices = @transform_17, window_bounds = array<i64: 2, 32, 32>}, {pipeline_mode = #tpu.pipeline_mode<synchronous>, transform_indices = @transform_18, window_bounds = array<i64: 2, 1, 32>}, {pipeline_mode = #tpu.pipeline_mode<synchronous>, transform_indices = @transform_19, window_bounds = array<i64: 2, 32, 32>}, {pipeline_mode = #tpu.pipeline_mode<synchronous>, transform_indices = @transform_20, window_bounds = array<i64: 2, 1, 32>}, {pipeline_mode = #tpu.pipeline_mode<synchronous>, transform_indices = @transform_21, window_bounds = array<i64: 32, 64>}, {pipeline_mode = #tpu.pipeline_mode<synchronous>, transform_indices = @transform_22, window_bounds = array<i64: 1, 64>}, {pipeline_mode = #tpu.pipeline_mode<synchronous>, transform_indices = @transform_23, window_bounds = array<i64: 64, 128>}, {pipeline_mode = #tpu.pipeline_mode<synchronous>, transform_indices = @transform_24, window_bounds = array<i64: 1, 128>}, {transform_indices = @transform_25, window_bounds = array<i64: 2, 128>}, {transform_indices = @transform_26, window_bounds = array<i64: 2, 128>}]} {
    %c0 = arith.constant 0 : index
    %c0_0 = arith.constant 0 : index
    %c0_1 = arith.constant 0 : index
    %0 = vector.load %arg1[%c0, %c0_0, %c0_1] : memref<2x8x16xbf16, #tpu.memory_space<vmem>>, vector<2x8x16xbf16>
    %1 = vector.shape_cast %0 : vector<2x8x16xbf16> to vector<16x16xbf16>
    %c0_2 = arith.constant 0 : index
    %c0_3 = arith.constant 0 : index
    %2 = vector.load %arg4[%c0_2, %c0_3] : memref<16x32xbf16, #tpu.memory_space<vmem>>, vector<16x32xbf16>
    %cst = arith.constant dense<0.000000e+00> : vector<16x32xf32>
    %3 = tpu.matmul %1, %2, %cst {dimension_numbers = #tpu.dot_dimension_numbers<[1], [0], [0], [1], [0, 0, 1, 1], [], []>} : vector<16x16xbf16>, vector<16x32xbf16>, vector<16x32xf32> -> vector<16x32xf32>
    %c0_4 = arith.constant 0 : index
    %c0_5 = arith.constant 0 : index
    %4 = vector.load %arg5[%c0_4, %c0_5] : memref<1x32xf32, #tpu.memory_space<vmem>>, vector<1x32xf32>
    %5 = vector.broadcast %4 : vector<1x32xf32> to vector<16x32xf32>
    %6 = arith.addf %3, %5 : vector<16x32xf32>
    %7 = math.tanh %6 : vector<16x32xf32>
    %c0_6 = arith.constant 0 : index
    %c0_7 = arith.constant 0 : index
    %c0_8 = arith.constant 0 : index
    %8 = vector.load %arg2[%c0_6, %c0_7, %c0_8] : memref<2x4x16xbf16, #tpu.memory_space<vmem>>, vector<2x4x16xbf16>
    %9 = vector.shape_cast %8 : vector<2x4x16xbf16> to vector<8x16xbf16>
    %c0_9 = arith.constant 0 : index
    %c0_10 = arith.constant 0 : index
    %10 = vector.load %arg6[%c0_9, %c0_10] : memref<16x32xbf16, #tpu.memory_space<vmem>>, vector<16x32xbf16>
    %cst_11 = arith.constant dense<0.000000e+00> : vector<8x32xf32>
    %11 = tpu.matmul %9, %10, %cst_11 {dimension_numbers = #tpu.dot_dimension_numbers<[1], [0], [0], [1], [0, 0, 1, 1], [], []>} : vector<8x16xbf16>, vector<16x32xbf16>, vector<8x32xf32> -> vector<8x32xf32>
    %c0_12 = arith.constant 0 : index
    %c0_13 = arith.constant 0 : index
    %12 = vector.load %arg7[%c0_12, %c0_13] : memref<1x32xf32, #tpu.memory_space<vmem>>, vector<1x32xf32>
    %13 = vector.broadcast %12 : vector<1x32xf32> to vector<8x32xf32>
    %14 = arith.addf %11, %13 : vector<8x32xf32>
    %15 = math.tanh %14 : vector<8x32xf32>
    %c0_14 = arith.constant 0 : index
    %c0_15 = arith.constant 0 : index
    %c0_16 = arith.constant 0 : index
    %16 = vector.load %arg3[%c0_14, %c0_15, %c0_16] : memref<2x8x32xbf16, #tpu.memory_space<vmem>>, vector<2x8x32xbf16>
    %17 = vector.shape_cast %16 : vector<2x8x32xbf16> to vector<16x32xbf16>
    %c0_17 = arith.constant 0 : index
    %c0_18 = arith.constant 0 : index
    %18 = vector.load %arg8[%c0_17, %c0_18] : memref<32x256xbf16, #tpu.memory_space<vmem>>, vector<32x256xbf16>
    %cst_19 = arith.constant dense<0.000000e+00> : vector<16x256xf32>
    %19 = tpu.matmul %17, %18, %cst_19 {dimension_numbers = #tpu.dot_dimension_numbers<[1], [0], [0], [1], [0, 0, 1, 1], [], []>} : vector<16x32xbf16>, vector<32x256xbf16>, vector<16x256xf32> -> vector<16x256xf32>
    %c0_20 = arith.constant 0 : index
    %c0_21 = arith.constant 0 : index
    %20 = vector.load %arg9[%c0_20, %c0_21] : memref<1x256xf32, #tpu.memory_space<vmem>>, vector<1x256xf32>
    %21 = vector.broadcast %20 : vector<1x256xf32> to vector<16x256xf32>
    %22 = arith.addf %19, %21 : vector<16x256xf32>
    %23 = vector.extract_strided_slice %22 {offsets = [0, 0], sizes = [16, 64], strides = [1, 1]} : vector<16x256xf32> to vector<16x64xf32>
    %24 = arith.truncf %23 : vector<16x64xf32> to vector<16x64xbf16>
    %25 = vector.shape_cast %24 : vector<16x64xbf16> to vector<2x8x64xbf16>
    %26 = vector.extract_strided_slice %22 {offsets = [0, 64], sizes = [16, 64], strides = [1, 1]} : vector<16x256xf32> to vector<16x64xf32>
    %27 = arith.truncf %26 : vector<16x64xf32> to vector<16x64xbf16>
    %28 = vector.shape_cast %27 : vector<16x64xbf16> to vector<2x8x64xbf16>
    %29 = vector.extract_strided_slice %22 {offsets = [0, 128], sizes = [16, 64], strides = [1, 1]} : vector<16x256xf32> to vector<16x64xf32>
    %cst_22 = arith.constant 0.000000e+00 : f32
    %30 = vector.broadcast %cst_22 : f32 to vector<16x64xf32>
    %31 = arith.maximumf %29, %30 : vector<16x64xf32>
    %32 = vector.shape_cast %31 : vector<16x64xf32> to vector<2x8x64xf32>
    %33 = vector.extract_strided_slice %22 {offsets = [0, 192], sizes = [16, 64], strides = [1, 1]} : vector<16x256xf32> to vector<16x64xf32>
    %cst_23 = arith.constant 0.000000e+00 : f32
    %34 = vector.broadcast %cst_23 : f32 to vector<16x64xf32>
    %35 = arith.maximumf %33, %34 : vector<16x64xf32>
    %36 = vector.shape_cast %35 : vector<16x64xf32> to vector<2x8x64xf32>
    %37 = arith.truncf %7 : vector<16x32xf32> to vector<16x32xbf16>
    %c0_24 = arith.constant 0 : index
    %c0_25 = arith.constant 0 : index
    %38 = vector.load %arg10[%c0_24, %c0_25] : memref<32x64xbf16, #tpu.memory_space<vmem>>, vector<32x64xbf16>
    %cst_26 = arith.constant dense<0.000000e+00> : vector<16x64xf32>
    %39 = tpu.matmul %37, %38, %cst_26 {dimension_numbers = #tpu.dot_dimension_numbers<[1], [0], [0], [1], [0, 0, 1, 1], [], []>} : vector<16x32xbf16>, vector<32x64xbf16>, vector<16x64xf32> -> vector<16x64xf32>
    %c0_27 = arith.constant 0 : index
    %c0_28 = arith.constant 0 : index
    %40 = vector.load %arg11[%c0_27, %c0_28] : memref<1x64xf32, #tpu.memory_space<vmem>>, vector<1x64xf32>
    %41 = vector.broadcast %40 : vector<1x64xf32> to vector<16x64xf32>
    %42 = arith.addf %39, %41 : vector<16x64xf32>
    %43 = arith.truncf %42 : vector<16x64xf32> to vector<16x64xbf16>
    %44 = vector.shape_cast %43 : vector<16x64xbf16> to vector<2x8x64xbf16>
    %45 = arith.truncf %15 : vector<8x32xf32> to vector<8x32xbf16>
    %c0_29 = arith.constant 0 : index
    %c0_30 = arith.constant 0 : index
    %46 = vector.load %arg12[%c0_29, %c0_30] : memref<32x64xbf16, #tpu.memory_space<vmem>>, vector<32x64xbf16>
    %cst_31 = arith.constant dense<0.000000e+00> : vector<8x64xf32>
    %47 = tpu.matmul %45, %46, %cst_31 {dimension_numbers = #tpu.dot_dimension_numbers<[1], [0], [0], [1], [0, 0, 1, 1], [], []>} : vector<8x32xbf16>, vector<32x64xbf16>, vector<8x64xf32> -> vector<8x64xf32>
    %c0_32 = arith.constant 0 : index
    %c0_33 = arith.constant 0 : index
    %48 = vector.load %arg13[%c0_32, %c0_33] : memref<1x64xf32, #tpu.memory_space<vmem>>, vector<1x64xf32>
    %49 = vector.broadcast %48 : vector<1x64xf32> to vector<8x64xf32>
    %50 = arith.addf %47, %49 : vector<8x64xf32>
    %51 = arith.truncf %50 : vector<8x64xf32> to vector<8x64xbf16>
    %52 = vector.shape_cast %51 : vector<8x64xbf16> to vector<2x4x64xbf16>
    %53 = vector.extract_strided_slice %25 {offsets = [0, 0, 0], sizes = [2, 8, 32], strides = [1, 1, 1]} : vector<2x8x64xbf16> to vector<2x8x32xbf16>
    %54 = vector.extract_strided_slice %44 {offsets = [0, 0, 0], sizes = [2, 8, 32], strides = [1, 1, 1]} : vector<2x8x64xbf16> to vector<2x8x32xbf16>
    "tpu.trace_start"() <{level = 10 : i32, message = "boh,bsh->bos"}> : () -> ()
    %cst_34 = arith.constant dense<0.000000e+00> : vector<2x8x8xf32>
    %55 = tpu.matmul %53, %54, %cst_34 {dimension_numbers = #tpu.dot_dimension_numbers<[2], [2], [1], [1], [0, 0, 0, 1, 1, 1], [0], [0]>} : vector<2x8x32xbf16>, vector<2x8x32xbf16>, vector<2x8x8xf32> -> vector<2x8x8xf32>
    "tpu.trace_stop"() : () -> ()
    %56 = vector.extract_strided_slice %28 {offsets = [0, 0, 0], sizes = [2, 8, 32], strides = [1, 1, 1]} : vector<2x8x64xbf16> to vector<2x8x32xbf16>
    %57 = vector.extract_strided_slice %52 {offsets = [0, 0, 0], sizes = [2, 4, 32], strides = [1, 1, 1]} : vector<2x4x64xbf16> to vector<2x4x32xbf16>
    "tpu.trace_start"() <{level = 10 : i32, message = "boh,bsh->bos"}> : () -> ()
    %cst_35 = arith.constant dense<0.000000e+00> : vector<2x8x4xf32>
    %58 = tpu.matmul %56, %57, %cst_35 {dimension_numbers = #tpu.dot_dimension_numbers<[2], [2], [1], [1], [0, 0, 0, 1, 1, 1], [0], [0]>} : vector<2x8x32xbf16>, vector<2x4x32xbf16>, vector<2x8x4xf32> -> vector<2x8x4xf32>
    "tpu.trace_stop"() : () -> ()
    %59 = vector.shape_cast %55 : vector<2x8x8xf32> to vector<2x64xf32>
    %cst_36 = arith.constant dense<0xFF800000> : vector<2xf32>
    %60 = vector.multi_reduction <maximumf>, %59, %cst_36 [1] : vector<2x64xf32> to vector<2xf32>
    %61 = vector.shape_cast %60 : vector<2xf32> to vector<2x1xf32>
    %62 = vector.broadcast %61 : vector<2x1xf32> to vector<2x64xf32>
    %63 = arith.subf %59, %62 : vector<2x64xf32>
    %64 = math.exp %63 : vector<2x64xf32>
    %cst_37 = arith.constant dense<0.000000e+00> : vector<2xf32>
    %65 = vector.multi_reduction <add>, %64, %cst_37 [1] : vector<2x64xf32> to vector<2xf32>
    %66 = vector.shape_cast %65 : vector<2xf32> to vector<2x1xf32>
    %67 = tpu.reciprocal %66 {approx = true} : vector<2x1xf32> -> vector<2x1xf32>
    %68 = vector.broadcast %67 : vector<2x1xf32> to vector<2x64xf32>
    %69 = arith.mulf %64, %68 : vector<2x64xf32>
    %70 = vector.shape_cast %69 : vector<2x64xf32> to vector<2x8x8xf32>
    %71 = vector.shape_cast %58 : vector<2x8x4xf32> to vector<2x32xf32>
    %cst_38 = arith.constant dense<0xFF800000> : vector<2xf32>
    %72 = vector.multi_reduction <maximumf>, %71, %cst_38 [1] : vector<2x32xf32> to vector<2xf32>
    %73 = vector.shape_cast %72 : vector<2xf32> to vector<2x1xf32>
    %74 = vector.broadcast %73 : vector<2x1xf32> to vector<2x32xf32>
    %75 = arith.subf %71, %74 : vector<2x32xf32>
    %76 = math.exp %75 : vector<2x32xf32>
    %cst_39 = arith.constant dense<0.000000e+00> : vector<2xf32>
    %77 = vector.multi_reduction <add>, %76, %cst_39 [1] : vector<2x32xf32> to vector<2xf32>
    %78 = vector.shape_cast %77 : vector<2xf32> to vector<2x1xf32>
    %79 = tpu.reciprocal %78 {approx = true} : vector<2x1xf32> -> vector<2x1xf32>
    %80 = vector.broadcast %79 : vector<2x1xf32> to vector<2x32xf32>
    %81 = arith.mulf %76, %80 : vector<2x32xf32>
    %82 = vector.shape_cast %81 : vector<2x32xf32> to vector<2x8x4xf32>
    %83 = vector.extract_strided_slice %25 {offsets = [0, 0, 32], sizes = [2, 8, 32], strides = [1, 1, 1]} : vector<2x8x64xbf16> to vector<2x8x32xbf16>
    %84 = vector.extract_strided_slice %44 {offsets = [0, 0, 32], sizes = [2, 8, 32], strides = [1, 1, 1]} : vector<2x8x64xbf16> to vector<2x8x32xbf16>
    "tpu.trace_start"() <{level = 10 : i32, message = "boh,bsh->bos"}> : () -> ()
    %cst_40 = arith.constant dense<0.000000e+00> : vector<2x8x8xf32>
    %85 = tpu.matmul %83, %84, %cst_40 {dimension_numbers = #tpu.dot_dimension_numbers<[2], [2], [1], [1], [0, 0, 0, 1, 1, 1], [0], [0]>} : vector<2x8x32xbf16>, vector<2x8x32xbf16>, vector<2x8x8xf32> -> vector<2x8x8xf32>
    "tpu.trace_stop"() : () -> ()
    %86 = vector.extract_strided_slice %28 {offsets = [0, 0, 32], sizes = [2, 8, 32], strides = [1, 1, 1]} : vector<2x8x64xbf16> to vector<2x8x32xbf16>
    %87 = vector.extract_strided_slice %52 {offsets = [0, 0, 32], sizes = [2, 4, 32], strides = [1, 1, 1]} : vector<2x4x64xbf16> to vector<2x4x32xbf16>
    "tpu.trace_start"() <{level = 10 : i32, message = "boh,bsh->bos"}> : () -> ()
    %cst_41 = arith.constant dense<0.000000e+00> : vector<2x8x4xf32>
    %88 = tpu.matmul %86, %87, %cst_41 {dimension_numbers = #tpu.dot_dimension_numbers<[2], [2], [1], [1], [0, 0, 0, 1, 1, 1], [0], [0]>} : vector<2x8x32xbf16>, vector<2x4x32xbf16>, vector<2x8x4xf32> -> vector<2x8x4xf32>
    "tpu.trace_stop"() : () -> ()
    %89 = vector.shape_cast %85 : vector<2x8x8xf32> to vector<2x64xf32>
    %cst_42 = arith.constant dense<0xFF800000> : vector<2xf32>
    %90 = vector.multi_reduction <maximumf>, %89, %cst_42 [1] : vector<2x64xf32> to vector<2xf32>
    %91 = vector.shape_cast %90 : vector<2xf32> to vector<2x1xf32>
    %92 = vector.broadcast %91 : vector<2x1xf32> to vector<2x64xf32>
    %93 = arith.subf %89, %92 : vector<2x64xf32>
    %94 = math.exp %93 : vector<2x64xf32>
    %cst_43 = arith.constant dense<0.000000e+00> : vector<2xf32>
    %95 = vector.multi_reduction <add>, %94, %cst_43 [1] : vector<2x64xf32> to vector<2xf32>
    %96 = vector.shape_cast %95 : vector<2xf32> to vector<2x1xf32>
    %97 = tpu.reciprocal %96 {approx = true} : vector<2x1xf32> -> vector<2x1xf32>
    %98 = vector.broadcast %97 : vector<2x1xf32> to vector<2x64xf32>
    %99 = arith.mulf %94, %98 : vector<2x64xf32>
    %100 = vector.shape_cast %99 : vector<2x64xf32> to vector<2x8x8xf32>
    %101 = vector.shape_cast %88 : vector<2x8x4xf32> to vector<2x32xf32>
    %cst_44 = arith.constant dense<0xFF800000> : vector<2xf32>
    %102 = vector.multi_reduction <maximumf>, %101, %cst_44 [1] : vector<2x32xf32> to vector<2xf32>
    %103 = vector.shape_cast %102 : vector<2xf32> to vector<2x1xf32>
    %104 = vector.broadcast %103 : vector<2x1xf32> to vector<2x32xf32>
    %105 = arith.subf %101, %104 : vector<2x32xf32>
    %106 = math.exp %105 : vector<2x32xf32>
    %cst_45 = arith.constant dense<0.000000e+00> : vector<2xf32>
    %107 = vector.multi_reduction <add>, %106, %cst_45 [1] : vector<2x32xf32> to vector<2xf32>
    %108 = vector.shape_cast %107 : vector<2xf32> to vector<2x1xf32>
    %109 = tpu.reciprocal %108 {approx = true} : vector<2x1xf32> -> vector<2x1xf32>
    %110 = vector.broadcast %109 : vector<2x1xf32> to vector<2x32xf32>
    %111 = arith.mulf %106, %110 : vector<2x32xf32>
    %112 = vector.shape_cast %111 : vector<2x32xf32> to vector<2x8x4xf32>
    %113 = tpu.concatenate %69, %99 in 1 : vector<2x64xf32>, vector<2x64xf32> -> vector<2x128xf32>
    %c0_46 = arith.constant 0 : index
    %c0_47 = arith.constant 0 : index
    %114 = vector.load %arg27[%c0_46, %c0_47] : memref<2x128xf32, #tpu.memory_space<vmem>>, vector<2x128xf32>
    tpu.vector_store %arg27[%c0_46, %c0_47], %113 {strides = array<i32>} : memref<2x128xf32, #tpu.memory_space<vmem>>, vector<2x128xf32>,
    %115 = arith.truncf %7 : vector<16x32xf32> to vector<16x32xbf16>
    %c0_48 = arith.constant 0 : index
    %c0_49 = arith.constant 0 : index
    %c0_50 = arith.constant 0 : index
    %116 = vector.load %arg14[%c0_48, %c0_49, %c0_50] : memref<2x32x32xbf16, #tpu.memory_space<vmem>>, vector<1x32x32xbf16>
    %117 = vector.shape_cast %116 : vector<1x32x32xbf16> to vector<32x32xbf16>
    %cst_51 = arith.constant dense<0.000000e+00> : vector<16x32xf32>
    %118 = tpu.matmul %115, %117, %cst_51 {dimension_numbers = #tpu.dot_dimension_numbers<[1], [0], [0], [1], [0, 0, 1, 1], [], []>} : vector<16x32xbf16>, vector<32x32xbf16>, vector<16x32xf32> -> vector<16x32xf32>
    %c0_52 = arith.constant 0 : index
    %c0_53 = arith.constant 0 : index
    %c0_54 = arith.constant 0 : index
    %119 = vector.load %arg15[%c0_52, %c0_53, %c0_54] : memref<2x1x32xf32, #tpu.memory_space<vmem>>, vector<1x1x32xf32>
    %120 = vector.shape_cast %119 : vector<1x1x32xf32> to vector<1x32xf32>
    %121 = vector.broadcast %120 : vector<1x32xf32> to vector<16x32xf32>
    %122 = arith.addf %118, %121 : vector<16x32xf32>
    %cst_55 = arith.constant 0.000000e+00 : f32
    %123 = vector.broadcast %cst_55 : f32 to vector<16x32xf32>
    %124 = arith.maximumf %122, %123 : vector<16x32xf32>
    %125 = vector.shape_cast %124 : vector<16x32xf32> to vector<2x8x32xf32>
    %126 = arith.truncf %15 : vector<8x32xf32> to vector<8x32xbf16>
    %c0_56 = arith.constant 0 : index
    %c0_57 = arith.constant 0 : index
    %c0_58 = arith.constant 0 : index
    %127 = vector.load %arg16[%c0_56, %c0_57, %c0_58] : memref<2x32x32xbf16, #tpu.memory_space<vmem>>, vector<1x32x32xbf16>
    %128 = vector.shape_cast %127 : vector<1x32x32xbf16> to vector<32x32xbf16>
    %cst_59 = arith.constant dense<0.000000e+00> : vector<8x32xf32>
    %129 = tpu.matmul %126, %128, %cst_59 {dimension_numbers = #tpu.dot_dimension_numbers<[1], [0], [0], [1], [0, 0, 1, 1], [], []>} : vector<8x32xbf16>, vector<32x32xbf16>, vector<8x32xf32> -> vector<8x32xf32>
    %c0_60 = arith.constant 0 : index
    %c0_61 = arith.constant 0 : index
    %c0_62 = arith.constant 0 : index
    %130 = vector.load %arg17[%c0_60, %c0_61, %c0_62] : memref<2x1x32xf32, #tpu.memory_space<vmem>>, vector<1x1x32xf32>
    %131 = vector.shape_cast %130 : vector<1x1x32xf32> to vector<1x32xf32>
    %132 = vector.broadcast %131 : vector<1x32xf32> to vector<8x32xf32>
    %133 = arith.addf %129, %132 : vector<8x32xf32>
    %cst_63 = arith.constant 0.000000e+00 : f32
    %134 = vector.broadcast %cst_63 : f32 to vector<8x32xf32>
    %135 = arith.maximumf %133, %134 : vector<8x32xf32>
    %136 = vector.shape_cast %135 : vector<8x32xf32> to vector<2x4x32xf32>
    %137 = arith.truncf %70 : vector<2x8x8xf32> to vector<2x8x8xbf16>
    %138 = arith.truncf %125 : vector<2x8x32xf32> to vector<2x8x32xbf16>
    "tpu.trace_start"() <{level = 10 : i32, message = "bos,bsh->boh"}> : () -> ()
    %cst_64 = arith.constant dense<0.000000e+00> : vector<2x8x32xf32>
    %139 = tpu.matmul %137, %138, %cst_64 {dimension_numbers = #tpu.dot_dimension_numbers<[2], [1], [1], [2], [0, 0, 0, 1, 1, 2], [0], [0]>} : vector<2x8x8xbf16>, vector<2x8x32xbf16>, vector<2x8x32xf32> -> vector<2x8x32xf32>
    "tpu.trace_stop"() : () -> ()
    %140 = vector.extract_strided_slice %32 {offsets = [0, 0, 0], sizes = [2, 8, 32], strides = [1, 1, 1]} : vector<2x8x64xf32> to vector<2x8x32xf32>
    %141 = arith.mulf %140, %139 : vector<2x8x32xf32>
    %cst_65 = arith.constant dense<0.000000e+00> : vector<2x32xf32>
    %142 = vector.multi_reduction <add>, %141, %cst_65 [1] : vector<2x8x32xf32> to vector<2x32xf32>
    %143 = arith.truncf %82 : vector<2x8x4xf32> to vector<2x8x4xbf16>
    %144 = arith.truncf %136 : vector<2x4x32xf32> to vector<2x4x32xbf16>
    "tpu.trace_start"() <{level = 10 : i32, message = "bos,bsh->boh"}> : () -> ()
    %cst_66 = arith.constant dense<0.000000e+00> : vector<2x8x32xf32>
    %145 = tpu.matmul %143, %144, %cst_66 {dimension_numbers = #tpu.dot_dimension_numbers<[2], [1], [1], [2], [0, 0, 0, 1, 1, 2], [0], [0]>} : vector<2x8x4xbf16>, vector<2x4x32xbf16>, vector<2x8x32xf32> -> vector<2x8x32xf32>
    "tpu.trace_stop"() : () -> ()
    %146 = vector.extract_strided_slice %36 {offsets = [0, 0, 0], sizes = [2, 8, 32], strides = [1, 1, 1]} : vector<2x8x64xf32> to vector<2x8x32xf32>
    %147 = arith.mulf %146, %145 : vector<2x8x32xf32>
    %cst_67 = arith.constant dense<0.000000e+00> : vector<2x32xf32>
    %148 = vector.multi_reduction <add>, %147, %cst_67 [1] : vector<2x8x32xf32> to vector<2x32xf32>
    %149 = arith.truncf %142 : vector<2x32xf32> to vector<2x32xbf16>
    %c0_68 = arith.constant 0 : index
    %c0_69 = arith.constant 0 : index
    %c0_70 = arith.constant 0 : index
    %150 = vector.load %arg18[%c0_68, %c0_69, %c0_70] : memref<2x32x32xbf16, #tpu.memory_space<vmem>>, vector<1x32x32xbf16>
    %151 = vector.shape_cast %150 : vector<1x32x32xbf16> to vector<32x32xbf16>
    %cst_71 = arith.constant dense<0.000000e+00> : vector<2x32xf32>
    %152 = tpu.matmul %149, %151, %cst_71 {dimension_numbers = #tpu.dot_dimension_numbers<[1], [0], [0], [1], [0, 0, 1, 1], [], []>} : vector<2x32xbf16>, vector<32x32xbf16>, vector<2x32xf32> -> vector<2x32xf32>
    %c0_72 = arith.constant 0 : index
    %c0_73 = arith.constant 0 : index
    %c0_74 = arith.constant 0 : index
    %153 = vector.load %arg19[%c0_72, %c0_73, %c0_74] : memref<2x1x32xf32, #tpu.memory_space<vmem>>, vector<1x1x32xf32>
    %154 = vector.shape_cast %153 : vector<1x1x32xf32> to vector<1x32xf32>
    %155 = vector.broadcast %154 : vector<1x32xf32> to vector<2x32xf32>
    %156 = arith.addf %152, %155 : vector<2x32xf32>
    %157 = arith.truncf %148 : vector<2x32xf32> to vector<2x32xbf16>
    %c0_75 = arith.constant 0 : index
    %c0_76 = arith.constant 0 : index
    %c0_77 = arith.constant 0 : index
    %158 = vector.load %arg20[%c0_75, %c0_76, %c0_77] : memref<2x32x32xbf16, #tpu.memory_space<vmem>>, vector<1x32x32xbf16>
    %159 = vector.shape_cast %158 : vector<1x32x32xbf16> to vector<32x32xbf16>
    %cst_78 = arith.constant dense<0.000000e+00> : vector<2x32xf32>
    %160 = tpu.matmul %157, %159, %cst_78 {dimension_numbers = #tpu.dot_dimension_numbers<[1], [0], [0], [1], [0, 0, 1, 1], [], []>} : vector<2x32xbf16>, vector<32x32xbf16>, vector<2x32xf32> -> vector<2x32xf32>
    %c0_79 = arith.constant 0 : index
    %c0_80 = arith.constant 0 : index
    %c0_81 = arith.constant 0 : index
    %161 = vector.load %arg21[%c0_79, %c0_80, %c0_81] : memref<2x1x32xf32, #tpu.memory_space<vmem>>, vector<1x1x32xf32>
    %162 = vector.shape_cast %161 : vector<1x1x32xf32> to vector<1x32xf32>
    %163 = vector.broadcast %162 : vector<1x32xf32> to vector<2x32xf32>
    %164 = arith.addf %160, %163 : vector<2x32xf32>
    %165 = vector.shape_cast %7 : vector<16x32xf32> to vector<2x8x32xf32>
    %166 = vector.shape_cast %156 : vector<2x32xf32> to vector<2x1x32xf32>
    %167 = vector.broadcast %166 : vector<2x1x32xf32> to vector<2x8x32xf32>
    %168 = arith.addf %165, %167 : vector<2x8x32xf32>
    %169 = vector.shape_cast %168 : vector<2x8x32xf32> to vector<16x32xf32>
    %170 = vector.shape_cast %15 : vector<8x32xf32> to vector<2x4x32xf32>
    %171 = vector.shape_cast %164 : vector<2x32xf32> to vector<2x1x32xf32>
    %172 = vector.broadcast %171 : vector<2x1x32xf32> to vector<2x4x32xf32>
    %173 = arith.addf %170, %172 : vector<2x4x32xf32>
    %174 = vector.shape_cast %173 : vector<2x4x32xf32> to vector<8x32xf32>
    %175 = arith.truncf %169 : vector<16x32xf32> to vector<16x32xbf16>
    %c1 = arith.constant 1 : index
    %c0_82 = arith.constant 0 : index
    %c0_83 = arith.constant 0 : index
    %176 = vector.load %arg14[%c1, %c0_82, %c0_83] : memref<2x32x32xbf16, #tpu.memory_space<vmem>>, vector<1x32x32xbf16>
    %177 = vector.shape_cast %176 : vector<1x32x32xbf16> to vector<32x32xbf16>
    %cst_84 = arith.constant dense<0.000000e+00> : vector<16x32xf32>
    %178 = tpu.matmul %175, %177, %cst_84 {dimension_numbers = #tpu.dot_dimension_numbers<[1], [0], [0], [1], [0, 0, 1, 1], [], []>} : vector<16x32xbf16>, vector<32x32xbf16>, vector<16x32xf32> -> vector<16x32xf32>
    %c1_85 = arith.constant 1 : index
    %c0_86 = arith.constant 0 : index
    %c0_87 = arith.constant 0 : index
    %179 = vector.load %arg15[%c1_85, %c0_86, %c0_87] : memref<2x1x32xf32, #tpu.memory_space<vmem>>, vector<1x1x32xf32>
    %180 = vector.shape_cast %179 : vector<1x1x32xf32> to vector<1x32xf32>
    %181 = vector.broadcast %180 : vector<1x32xf32> to vector<16x32xf32>
    %182 = arith.addf %178, %181 : vector<16x32xf32>
    %cst_88 = arith.constant 0.000000e+00 : f32
    %183 = vector.broadcast %cst_88 : f32 to vector<16x32xf32>
    %184 = arith.maximumf %182, %183 : vector<16x32xf32>
    %185 = vector.shape_cast %184 : vector<16x32xf32> to vector<2x8x32xf32>
    %186 = arith.truncf %174 : vector<8x32xf32> to vector<8x32xbf16>
    %c1_89 = arith.constant 1 : index
    %c0_90 = arith.constant 0 : index
    %c0_91 = arith.constant 0 : index
    %187 = vector.load %arg16[%c1_89, %c0_90, %c0_91] : memref<2x32x32xbf16, #tpu.memory_space<vmem>>, vector<1x32x32xbf16>
    %188 = vector.shape_cast %187 : vector<1x32x32xbf16> to vector<32x32xbf16>
    %cst_92 = arith.constant dense<0.000000e+00> : vector<8x32xf32>
    %189 = tpu.matmul %186, %188, %cst_92 {dimension_numbers = #tpu.dot_dimension_numbers<[1], [0], [0], [1], [0, 0, 1, 1], [], []>} : vector<8x32xbf16>, vector<32x32xbf16>, vector<8x32xf32> -> vector<8x32xf32>
    %c1_93 = arith.constant 1 : index
    %c0_94 = arith.constant 0 : index
    %c0_95 = arith.constant 0 : index
    %190 = vector.load %arg17[%c1_93, %c0_94, %c0_95] : memref<2x1x32xf32, #tpu.memory_space<vmem>>, vector<1x1x32xf32>
    %191 = vector.shape_cast %190 : vector<1x1x32xf32> to vector<1x32xf32>
    %192 = vector.broadcast %191 : vector<1x32xf32> to vector<8x32xf32>
    %193 = arith.addf %189, %192 : vector<8x32xf32>
    %cst_96 = arith.constant 0.000000e+00 : f32
    %194 = vector.broadcast %cst_96 : f32 to vector<8x32xf32>
    %195 = arith.maximumf %193, %194 : vector<8x32xf32>
    %196 = vector.shape_cast %195 : vector<8x32xf32> to vector<2x4x32xf32>
    %197 = arith.truncf %100 : vector<2x8x8xf32> to vector<2x8x8xbf16>
    %198 = arith.truncf %185 : vector<2x8x32xf32> to vector<2x8x32xbf16>
    "tpu.trace_start"() <{level = 10 : i32, message = "bos,bsh->boh"}> : () -> ()
    %cst_97 = arith.constant dense<0.000000e+00> : vector<2x8x32xf32>
    %199 = tpu.matmul %197, %198, %cst_97 {dimension_numbers = #tpu.dot_dimension_numbers<[2], [1], [1], [2], [0, 0, 0, 1, 1, 2], [0], [0]>} : vector<2x8x8xbf16>, vector<2x8x32xbf16>, vector<2x8x32xf32> -> vector<2x8x32xf32>
    "tpu.trace_stop"() : () -> ()
    %200 = vector.extract_strided_slice %32 {offsets = [0, 0, 32], sizes = [2, 8, 32], strides = [1, 1, 1]} : vector<2x8x64xf32> to vector<2x8x32xf32>
    %201 = arith.mulf %200, %199 : vector<2x8x32xf32>
    %cst_98 = arith.constant dense<0.000000e+00> : vector<2x32xf32>
    %202 = vector.multi_reduction <add>, %201, %cst_98 [1] : vector<2x8x32xf32> to vector<2x32xf32>
    %203 = arith.truncf %112 : vector<2x8x4xf32> to vector<2x8x4xbf16>
    %204 = arith.truncf %196 : vector<2x4x32xf32> to vector<2x4x32xbf16>
    "tpu.trace_start"() <{level = 10 : i32, message = "bos,bsh->boh"}> : () -> ()
    %cst_99 = arith.constant dense<0.000000e+00> : vector<2x8x32xf32>
    %205 = tpu.matmul %203, %204, %cst_99 {dimension_numbers = #tpu.dot_dimension_numbers<[2], [1], [1], [2], [0, 0, 0, 1, 1, 2], [0], [0]>} : vector<2x8x4xbf16>, vector<2x4x32xbf16>, vector<2x8x32xf32> -> vector<2x8x32xf32>
    "tpu.trace_stop"() : () -> ()
    %206 = vector.extract_strided_slice %36 {offsets = [0, 0, 32], sizes = [2, 8, 32], strides = [1, 1, 1]} : vector<2x8x64xf32> to vector<2x8x32xf32>
    %207 = arith.mulf %206, %205 : vector<2x8x32xf32>
    %cst_100 = arith.constant dense<0.000000e+00> : vector<2x32xf32>
    %208 = vector.multi_reduction <add>, %207, %cst_100 [1] : vector<2x8x32xf32> to vector<2x32xf32>
    %209 = arith.truncf %202 : vector<2x32xf32> to vector<2x32xbf16>
    %c1_101 = arith.constant 1 : index
    %c0_102 = arith.constant 0 : index
    %c0_103 = arith.constant 0 : index
    %210 = vector.load %arg18[%c1_101, %c0_102, %c0_103] : memref<2x32x32xbf16, #tpu.memory_space<vmem>>, vector<1x32x32xbf16>
    %211 = vector.shape_cast %210 : vector<1x32x32xbf16> to vector<32x32xbf16>
    %cst_104 = arith.constant dense<0.000000e+00> : vector<2x32xf32>
    %212 = tpu.matmul %209, %211, %cst_104 {dimension_numbers = #tpu.dot_dimension_numbers<[1], [0], [0], [1], [0, 0, 1, 1], [], []>} : vector<2x32xbf16>, vector<32x32xbf16>, vector<2x32xf32> -> vector<2x32xf32>
    %c1_105 = arith.constant 1 : index
    %c0_106 = arith.constant 0 : index
    %c0_107 = arith.constant 0 : index
    %213 = vector.load %arg19[%c1_105, %c0_106, %c0_107] : memref<2x1x32xf32, #tpu.memory_space<vmem>>, vector<1x1x32xf32>
    %214 = vector.shape_cast %213 : vector<1x1x32xf32> to vector<1x32xf32>
    %215 = vector.broadcast %214 : vector<1x32xf32> to vector<2x32xf32>
    %216 = arith.addf %212, %215 : vector<2x32xf32>
    %217 = arith.truncf %208 : vector<2x32xf32> to vector<2x32xbf16>
    %c1_108 = arith.constant 1 : index
    %c0_109 = arith.constant 0 : index
    %c0_110 = arith.constant 0 : index
    %218 = vector.load %arg20[%c1_108, %c0_109, %c0_110] : memref<2x32x32xbf16, #tpu.memory_space<vmem>>, vector<1x32x32xbf16>
    %219 = vector.shape_cast %218 : vector<1x32x32xbf16> to vector<32x32xbf16>
    %cst_111 = arith.constant dense<0.000000e+00> : vector<2x32xf32>
    %220 = tpu.matmul %217, %219, %cst_111 {dimension_numbers = #tpu.dot_dimension_numbers<[1], [0], [0], [1], [0, 0, 1, 1], [], []>} : vector<2x32xbf16>, vector<32x32xbf16>, vector<2x32xf32> -> vector<2x32xf32>
    %c1_112 = arith.constant 1 : index
    %c0_113 = arith.constant 0 : index
    %c0_114 = arith.constant 0 : index
    %221 = vector.load %arg21[%c1_112, %c0_113, %c0_114] : memref<2x1x32xf32, #tpu.memory_space<vmem>>, vector<1x1x32xf32>
    %222 = vector.shape_cast %221 : vector<1x1x32xf32> to vector<1x32xf32>
    %223 = vector.broadcast %222 : vector<1x32xf32> to vector<2x32xf32>
    %224 = arith.addf %220, %223 : vector<2x32xf32>
    %225 = vector.shape_cast %169 : vector<16x32xf32> to vector<2x8x32xf32>
    %226 = vector.shape_cast %216 : vector<2x32xf32> to vector<2x1x32xf32>
    %227 = vector.broadcast %226 : vector<2x1x32xf32> to vector<2x8x32xf32>
    %228 = arith.addf %225, %227 : vector<2x8x32xf32>
    %229 = vector.shape_cast %228 : vector<2x8x32xf32> to vector<16x32xf32>
    %230 = vector.shape_cast %174 : vector<8x32xf32> to vector<2x4x32xf32>
    %231 = vector.shape_cast %224 : vector<2x32xf32> to vector<2x1x32xf32>
    %232 = vector.broadcast %231 : vector<2x1x32xf32> to vector<2x4x32xf32>
    %233 = arith.addf %230, %232 : vector<2x4x32xf32>
    %234 = vector.shape_cast %233 : vector<2x4x32xf32> to vector<8x32xf32>
    %235 = vector.shape_cast %229 : vector<16x32xf32> to vector<2x8x32xf32>
    %cst_115 = arith.constant dense<0.000000e+00> : vector<2x32xf32>
    %236 = vector.multi_reduction <add>, %235, %cst_115 [1] : vector<2x8x32xf32> to vector<2x32xf32>
    %237 = vector.shape_cast %234 : vector<8x32xf32> to vector<2x4x32xf32>
    %cst_116 = arith.constant dense<0.000000e+00> : vector<2x32xf32>
    %238 = vector.multi_reduction <add>, %237, %cst_116 [1] : vector<2x4x32xf32> to vector<2x32xf32>
    %239 = arith.addf %236, %238 : vector<2x32xf32>
    %240 = arith.truncf %239 : vector<2x32xf32> to vector<2x32xbf16>
    %c0_117 = arith.constant 0 : index
    %c0_118 = arith.constant 0 : index
    %241 = vector.load %arg22[%c0_117, %c0_118] : memref<32x64xbf16, #tpu.memory_space<vmem>>, vector<32x64xbf16>
    %cst_119 = arith.constant dense<0.000000e+00> : vector<2x64xf32>
    %242 = tpu.matmul %240, %241, %cst_119 {dimension_numbers = #tpu.dot_dimension_numbers<[1], [0], [0], [1], [0, 0, 1, 1], [], []>} : vector<2x32xbf16>, vector<32x64xbf16>, vector<2x64xf32> -> vector<2x64xf32>
    %c0_120 = arith.constant 0 : index
    %c0_121 = arith.constant 0 : index
    %243 = vector.load %arg23[%c0_120, %c0_121] : memref<1x64xf32, #tpu.memory_space<vmem>>, vector<1x64xf32>
    %244 = vector.broadcast %243 : vector<1x64xf32> to vector<2x64xf32>
    %245 = arith.addf %242, %244 : vector<2x64xf32>
    %cst_122 = arith.constant 0.000000e+00 : f32
    %246 = vector.broadcast %cst_122 : f32 to vector<2x64xf32>
    %247 = arith.maximumf %245, %246 : vector<2x64xf32>
    %248 = arith.truncf %247 : vector<2x64xf32> to vector<2x64xbf16>
    %c0_123 = arith.constant 0 : index
    %c0_124 = arith.constant 0 : index
    %249 = vector.load %arg24[%c0_123, %c0_124] : memref<64x128xbf16, #tpu.memory_space<vmem>>, vector<64x128xbf16>
    %cst_125 = arith.constant dense<0.000000e+00> : vector<2x128xf32>
    %250 = tpu.matmul %248, %249, %cst_125 {dimension_numbers = #tpu.dot_dimension_numbers<[1], [0], [0], [1], [0, 0, 1, 1], [], []>} : vector<2x64xbf16>, vector<64x128xbf16>, vector<2x128xf32> -> vector<2x128xf32>
    %c0_126 = arith.constant 0 : index
    %c0_127 = arith.constant 0 : index
    %251 = vector.load %arg25[%c0_126, %c0_127] : memref<1x128xf32, #tpu.memory_space<vmem>>, vector<1x128xf32>
    %252 = vector.broadcast %251 : vector<1x128xf32> to vector<2x128xf32>
    %253 = arith.addf %250, %252 : vector<2x128xf32>
    %c0_128 = arith.constant 0 : index
    %c0_129 = arith.constant 0 : index
    %254 = vector.load %arg26[%c0_128, %c0_129] : memref<2x128xf32, #tpu.memory_space<vmem>>, vector<2x128xf32>
    tpu.vector_store %arg26[%c0_128, %c0_129], %253 {strides = array<i32>} : memref<2x128xf32, #tpu.memory_space<vmem>>, vector<2x128xf32>,
    return
  }
  func.func @transform_0(%arg0: i32) -> (i32, i32, i32) {
    %c0_i32 = arith.constant 0 : i32
    %c0_i32_0 = arith.constant 0 : i32
    %c0_i32_1 = arith.constant 0 : i32
    return %arg0, %c0_i32, %c0_i32_0 : i32, i32, i32
  }
  func.func @transform_1(%arg0: i32) -> (i32, i32, i32) {
    %c0_i32 = arith.constant 0 : i32
    %c0_i32_0 = arith.constant 0 : i32
    %c0_i32_1 = arith.constant 0 : i32
    return %arg0, %c0_i32, %c0_i32_0 : i32, i32, i32
  }
  func.func @transform_2(%arg0: i32) -> (i32, i32, i32) {
    %c0_i32 = arith.constant 0 : i32
    %c0_i32_0 = arith.constant 0 : i32
    %c0_i32_1 = arith.constant 0 : i32
    return %arg0, %c0_i32, %c0_i32_0 : i32, i32, i32
  }
  func.func @transform_3(%arg0: i32) -> (i32, i32) {
    %c0_i32 = arith.constant 0 : i32
    %c0_i32_0 = arith.constant 0 : i32
    %c0_i32_1 = arith.constant 0 : i32
    return %c0_i32, %c0_i32_0 : i32, i32
  }
  func.func @transform_4(%arg0: i32) -> (i32, i32) {
    %c0_i32 = arith.constant 0 : i32
    %c0_i32_0 = arith.constant 0 : i32
    %c0_i32_1 = arith.constant 0 : i32
    return %c0_i32, %c0_i32_0 : i32, i32
  }
  func.func @transform_5(%arg0: i32) -> (i32, i32) {
    %c0_i32 = arith.constant 0 : i32
    %c0_i32_0 = arith.constant 0 : i32
    %c0_i32_1 = arith.constant 0 : i32
    return %c0_i32, %c0_i32_0 : i32, i32
  }
  func.func @transform_6(%arg0: i32) -> (i32, i32) {
    %c0_i32 = arith.constant 0 : i32
    %c0_i32_0 = arith.constant 0 : i32
    %c0_i32_1 = arith.constant 0 : i32
    return %c0_i32, %c0_i32_0 : i32, i32
  }
  func.func @transform_7(%arg0: i32) -> (i32, i32) {
    %c0_i32 = arith.constant 0 : i32
    %c0_i32_0 = arith.constant 0 : i32
    %c0_i32_1 = arith.constant 0 : i32
    return %c0_i32, %c0_i32_0 : i32, i32
  }
  func.func @transform_8(%arg0: i32) -> (i32, i32) {
    %c0_i32 = arith.constant 0 : i32
    %c0_i32_0 = arith.constant 0 : i32
    %c0_i32_1 = arith.constant 0 : i32
    return %c0_i32, %c0_i32_0 : i32, i32
  }
  func.func @transform_9(%arg0: i32) -> (i32, i32) {
    %c0_i32 = arith.constant 0 : i32
    %c0_i32_0 = arith.constant 0 : i32
    %c0_i32_1 = arith.constant 0 : i32
    return %c0_i32, %c0_i32_0 : i32, i32
  }
  func.func @transform_10(%arg0: i32) -> (i32, i32) {
    %c0_i32 = arith.constant 0 : i32
    %c0_i32_0 = arith.constant 0 : i32
    %c0_i32_1 = arith.constant 0 : i32
    return %c0_i32, %c0_i32_0 : i32, i32
  }
  func.func @transform_11(%arg0: i32) -> (i32, i32) {
    %c0_i32 = arith.constant 0 : i32
    %c0_i32_0 = arith.constant 0 : i32
    %c0_i32_1 = arith.constant 0 : i32
    return %c0_i32, %c0_i32_0 : i32, i32
  }
  func.func @transform_12(%arg0: i32) -> (i32, i32) {
    %c0_i32 = arith.constant 0 : i32
    %c0_i32_0 = arith.constant 0 : i32
    %c0_i32_1 = arith.constant 0 : i32
    return %c0_i32, %c0_i32_0 : i32, i32
  }
  func.func @transform_13(%arg0: i32) -> (i32, i32, i32) {
    %c0_i32 = arith.constant 0 : i32
    %c0_i32_0 = arith.constant 0 : i32
    %c0_i32_1 = arith.constant 0 : i32
    %c0_i32_2 = arith.constant 0 : i32
    return %c0_i32, %c0_i32_0, %c0_i32_1 : i32, i32, i32
  }
  func.func @transform_14(%arg0: i32) -> (i32, i32, i32) {
    %c0_i32 = arith.constant 0 : i32
    %c0_i32_0 = arith.constant 0 : i32
    %c0_i32_1 = arith.constant 0 : i32
    %c0_i32_2 = arith.constant 0 : i32
    return %c0_i32, %c0_i32_0, %c0_i32_1 : i32, i32, i32
  }
  func.func @transform_15(%arg0: i32) -> (i32, i32, i32) {
    %c0_i32 = arith.constant 0 : i32
    %c0_i32_0 = arith.constant 0 : i32
    %c0_i32_1 = arith.constant 0 : i32
    %c0_i32_2 = arith.constant 0 : i32
    return %c0_i32, %c0_i32_0, %c0_i32_1 : i32, i32, i32
  }
  func.func @transform_16(%arg0: i32) -> (i32, i32, i32) {
    %c0_i32 = arith.constant 0 : i32
    %c0_i32_0 = arith.constant 0 : i32
    %c0_i32_1 = arith.constant 0 : i32
    %c0_i32_2 = arith.constant 0 : i32
    return %c0_i32, %c0_i32_0, %c0_i32_1 : i32, i32, i32
  }
  func.func @transform_17(%arg0: i32) -> (i32, i32, i32) {
    %c0_i32 = arith.constant 0 : i32
    %c0_i32_0 = arith.constant 0 : i32
    %c0_i32_1 = arith.constant 0 : i32
    %c0_i32_2 = arith.constant 0 : i32
    return %c0_i32, %c0_i32_0, %c0_i32_1 : i32, i32, i32
  }
  func.func @transform_18(%arg0: i32) -> (i32, i32, i32) {
    %c0_i32 = arith.constant 0 : i32
    %c0_i32_0 = arith.constant 0 : i32
    %c0_i32_1 = arith.constant 0 : i32
    %c0_i32_2 = arith.constant 0 : i32
    return %c0_i32, %c0_i32_0, %c0_i32_1 : i32, i32, i32
  }
  func.func @transform_19(%arg0: i32) -> (i32, i32, i32) {
    %c0_i32 = arith.constant 0 : i32
    %c0_i32_0 = arith.constant 0 : i32
    %c0_i32_1 = arith.constant 0 : i32
    %c0_i32_2 = arith.constant 0 : i32
    return %c0_i32, %c0_i32_0, %c0_i32_1 : i32, i32, i32
  }
  func.func @transform_20(%arg0: i32) -> (i32, i32, i32) {
    %c0_i32 = arith.constant 0 : i32
    %c0_i32_0 = arith.constant 0 : i32
    %c0_i32_1 = arith.constant 0 : i32
    %c0_i32_2 = arith.constant 0 : i32
    return %c0_i32, %c0_i32_0, %c0_i32_1 : i32, i32, i32
  }
  func.func @transform_21(%arg0: i32) -> (i32, i32) {
    %c0_i32 = arith.constant 0 : i32
    %c0_i32_0 = arith.constant 0 : i32
    %c0_i32_1 = arith.constant 0 : i32
    return %c0_i32, %c0_i32_0 : i32, i32
  }
  func.func @transform_22(%arg0: i32) -> (i32, i32) {
    %c0_i32 = arith.constant 0 : i32
    %c0_i32_0 = arith.constant 0 : i32
    %c0_i32_1 = arith.constant 0 : i32
    return %c0_i32, %c0_i32_0 : i32, i32
  }
  func.func @transform_23(%arg0: i32) -> (i32, i32) {
    %c0_i32 = arith.constant 0 : i32
    %c0_i32_0 = arith.constant 0 : i32
    %c0_i32_1 = arith.constant 0 : i32
    return %c0_i32, %c0_i32_0 : i32, i32
  }
  func.func @transform_24(%arg0: i32) -> (i32, i32) {
    %c0_i32 = arith.constant 0 : i32
    %c0_i32_0 = arith.constant 0 : i32
    %c0_i32_1 = arith.constant 0 : i32
    return %c0_i32, %c0_i32_0 : i32, i32
  }
  func.func @transform_25(%arg0: i32) -> (i32, i32) {
    %c0_i32 = arith.constant 0 : i32
    %c0_i32_0 = arith.constant 0 : i32
    return %arg0, %c0_i32 : i32, i32
  }
  func.func @transform_26(%arg0: i32) -> (i32, i32) {
    %c0_i32 = arith.constant 0 : i32
    %c0_i32_0 = arith.constant 0 : i32
    return %arg0, %c0_i32 : i32, i32
  }
}

</mosaic_0001>

<llo_original>
// kernel: ban_forward.1
$region0: #{ban_forward.1}
  #allocation0 [shape = 'u32[]', space=smem, size = 0x4, offset = 0x4, fixed_abs, tag = 'smem constant byte address 0x4 - core index']
  #allocation1 [shape = 'u32[72,128]{1,0:T(1,128)}', space=vmem, size = 0x9000, scoped, tag = 'internal scratch']
  %s0 = inlined_call_operand.vmem [shape: bf16[2,8,16], index: 0, kind: input, shape index: {}]
  %s1 = inlined_call_operand.vmem [shape: bf16[2,4,16], index: 1, kind: input, shape index: {}]
  %s2 = inlined_call_operand.vmem [shape: bf16[2,8,32], index: 2, kind: input, shape index: {}]
  %s3 = inlined_call_operand.vmem [shape: bf16[16,32], index: 3, kind: input, shape index: {}]
  %s4 = inlined_call_operand.vmem [shape: f32[1,32], index: 4, kind: input, shape index: {}]
  %s5 = inlined_call_operand.vmem [shape: bf16[16,32], index: 5, kind: input, shape index: {}]
  %s6 = inlined_call_operand.vmem [shape: f32[1,32], index: 6, kind: input, shape index: {}]
  %s7 = inlined_call_operand.vmem [shape: bf16[32,256], index: 7, kind: input, shape index: {}]
  %s8 = inlined_call_operand.vmem [shape: f32[1,256], index: 8, kind: input, shape index: {}]
  %s9 = inlined_call_operand.vmem [shape: bf16[32,64], index: 9, kind: input, shape index: {}]
  %s10 = inlined_call_operand.vmem [shape: f32[1,64], index: 10, kind: input, shape index: {}]
  %s11 = inlined_call_operand.vmem [shape: bf16[32,64], index: 11, kind: input, shape index: {}]
  %s12 = inlined_call_operand.vmem [shape: f32[1,64], index: 12, kind: input, shape index: {}]
  %s13 = inlined_call_operand.vmem [shape: bf16[2,32,32], index: 13, kind: input, shape index: {}]
  %s14 = inlined_call_operand.vmem [shape: f32[2,1,32], index: 14, kind: input, shape index: {}]
  %s15 = inlined_call_operand.vmem [shape: bf16[2,32,32], index: 15, kind: input, shape index: {}]
  %s16 = inlined_call_operand.vmem [shape: f32[2,1,32], index: 16, kind: input, shape index: {}]
  %s17 = inlined_call_operand.vmem [shape: bf16[2,32,32], index: 17, kind: input, shape index: {}]
  %s18 = inlined_call_operand.vmem [shape: f32[2,1,32], index: 18, kind: input, shape index: {}]
  %s19 = inlined_call_operand.vmem [shape: bf16[2,32,32], index: 19, kind: input, shape index: {}]
  %s20 = inlined_call_operand.vmem [shape: f32[2,1,32], index: 20, kind: input, shape index: {}]
  %s21 = inlined_call_operand.vmem [shape: bf16[32,64], index: 21, kind: input, shape index: {}]
  %s22 = inlined_call_operand.vmem [shape: f32[1,64], index: 22, kind: input, shape index: {}]
  %s23 = inlined_call_operand.vmem [shape: bf16[64,128], index: 23, kind: input, shape index: {}]
  %s24 = inlined_call_operand.vmem [shape: f32[1,128], index: 24, kind: input, shape index: {}]
  %s25 = inlined_call_operand.hbm [shape: f32[2,128], index: 25, kind: output, shape index: {0}]
  %s26 = inlined_call_operand.vmem [shape: f32[2,128], index: 26, kind: output, shape index: {1}]
  %27 = xla_tuple %s25, %s26
  %s28 = sld [smem:[#allocation0]]
  $region118: #{ban_forward.1} parent=0
    _
  %s30 = ssub.s32 1, %s28
  %s31 = scalar_select 0, %s30, %s28
  $region1: #{ban_forward.1} parent=0
    #allocation2 [shape = 'u8[1024]{0}', space=vmem, size = 0x400, scoped, tag = 'output window, operand 0, single buffered']
    #allocation3 [shape = 's32[1]{0}', space=sflag, size = 0x4, scoped, tag = 'scoped memory for ban_forward.1']
    %32 = vsyncpa [#allocation3], 0
    // Predicated region
    $region2: #{ban_forward.1} parent=1 // pred_check
      _
    $region3: #{ban_forward.1} parent=1 // pred_check_branch
      %34 = sbr.rel (0) target = $region5
    $region4: #{ban_forward.1} parent=1 // pred_region
      _
    $region5: #{ban_forward.1} parent=1 // pred_fallthru
      _
    // Predicated region
    $region6: #{ban_forward.1} parent=1 // pred_check
      _
    $region7: #{ban_forward.1} parent=1 // pred_check_branch
      %36 = sbr.rel (0) target = $region9
    $region8: #{ban_forward.1} parent=1 // pred_region
      _
    $region9: #{ban_forward.1} parent=1 // pred_fallthru
      _
    // Predicated region
    $region10: #{ban_forward.1} parent=1 // pred_check
      _
    $region11: #{ban_forward.1} parent=1 // pred_check_branch
      %38 = sbr.rel (0) target = $region13
    $region12: #{ban_forward.1} parent=1 // pred_region
      _
    $region13: #{ban_forward.1} parent=1 // pred_fallthru
      _
    // Predicated region
    $region14: #{ban_forward.1} parent=1 // pred_check
      _
    $region15: #{ban_forward.1} parent=1 // pred_check_branch
      %40 = sbr.rel (0) target = $region17
    $region16: #{ban_forward.1} parent=1 // pred_region
      _
    $region17: #{ban_forward.1} parent=1 // pred_fallthru
      _
    // Predicated region
    $region18: #{ban_forward.1} parent=1 // pred_check
      _
    $region19: #{ban_forward.1} parent=1 // pred_check_branch
      %42 = sbr.rel (0) target = $region21
    $region20: #{ban_forward.1} parent=1 // pred_region
      _
    $region21: #{ban_forward.1} parent=1 // pred_fallthru
      _
    // Predicated region
    $region22: #{ban_forward.1} parent=1 // pred_check
      _
    $region23: #{ban_forward.1} parent=1 // pred_check_branch
      %44 = sbr.rel (0) target = $region25
    $region24: #{ban_forward.1} parent=1 // pred_region
      _
    $region25: #{ban_forward.1} parent=1 // pred_fallthru
      _
    // Predicated region
    $region26: #{ban_forward.1} parent=1 // pred_check
      _
    $region27: #{ban_forward.1} parent=1 // pred_check_branch
      %46 = sbr.rel (0) target = $region29
    $region28: #{ban_forward.1} parent=1 // pred_region
      _
    $region29: #{ban_forward.1} parent=1 // pred_fallthru
      _
    // Predicated region
    $region30: #{ban_forward.1} parent=1 // pred_check
      _
    $region31: #{ban_forward.1} parent=1 // pred_check_branch
      %48 = sbr.rel (0) target = $region33
    $region32: #{ban_forward.1} parent=1 // pred_region
      _
    $region33: #{ban_forward.1} parent=1 // pred_fallthru
      _
    // Predicated region
    $region34: #{ban_forward.1} parent=1 // pred_check
      _
    $region35: #{ban_forward.1} parent=1 // pred_check_branch
      %50 = sbr.rel (0) target = $region37
    $region36: #{ban_forward.1} parent=1 // pred_region
      _
    $region37: #{ban_forward.1} parent=1 // pred_fallthru
      _
    // Predicated region
    $region38: #{ban_forward.1} parent=1 // pred_check
      _
    $region39: #{ban_forward.1} parent=1 // pred_check_branch
      %52 = sbr.rel (0) target = $region41
    $region40: #{ban_forward.1} parent=1 // pred_region
      _
    $region41: #{ban_forward.1} parent=1 // pred_fallthru
      _
    // Predicated region
    $region42: #{ban_forward.1} parent=1 // pred_check
      _
    $region43: #{ban_forward.1} parent=1 // pred_check_branch
      %54 = sbr.rel (0) target = $region45
    $region44: #{ban_forward.1} parent=1 // pred_region
      _
    $region45: #{ban_forward.1} parent=1 // pred_fallthru
      _
    // Predicated region
    $region46: #{ban_forward.1} parent=1 // pred_check
      _
    $region47: #{ban_forward.1} parent=1 // pred_check_branch
      %56 = sbr.rel (0) target = $region49
    $region48: #{ban_forward.1} parent=1 // pred_region
      _
    $region49: #{ban_forward.1} parent=1 // pred_fallthru
      _
    // Predicated region
    $region50: #{ban_forward.1} parent=1 // pred_check
      _
    $region51: #{ban_forward.1} parent=1 // pred_check_branch
      %58 = sbr.rel (0) target = $region53
    $region52: #{ban_forward.1} parent=1 // pred_region
      _
    $region53: #{ban_forward.1} parent=1 // pred_fallthru
      _
    // Predicated region
    $region54: #{ban_forward.1} parent=1 // pred_check
      _
    $region55: #{ban_forward.1} parent=1 // pred_check_branch
      %60 = sbr.rel (0) target = $region57
    $region56: #{ban_forward.1} parent=1 // pred_region
      _
    $region57: #{ban_forward.1} parent=1 // pred_fallthru
      _
    // Predicated region
    $region58: #{ban_forward.1} parent=1 // pred_check
      _
    $region59: #{ban_forward.1} parent=1 // pred_check_branch
      %62 = sbr.rel (0) target = $region61
    $region60: #{ban_forward.1} parent=1 // pred_region
      _
    $region61: #{ban_forward.1} parent=1 // pred_fallthru
      _
    // Predicated region
    $region62: #{ban_forward.1} parent=1 // pred_check
      _
    $region63: #{ban_forward.1} parent=1 // pred_check_branch
      %64 = sbr.rel (0) target = $region65
    $region64: #{ban_forward.1} parent=1 // pred_region
      _
    $region65: #{ban_forward.1} parent=1 // pred_fallthru
      _
    // Predicated region
    $region66: #{ban_forward.1} parent=1 // pred_check
      _
    $region67: #{ban_forward.1} parent=1 // pred_check_branch
      %66 = sbr.rel (0) target = $region69
    $region68: #{ban_forward.1} parent=1 // pred_region
      _
    $region69: #{ban_forward.1} parent=1 // pred_fallthru
      _
    // Predicated region
    $region70: #{ban_forward.1} parent=1 // pred_check
      _
    $region71: #{ban_forward.1} parent=1 // pred_check_branch
      %68 = sbr.rel (0) target = $region73
    $region72: #{ban_forward.1} parent=1 // pred_region
      _
    $region73: #{ban_forward.1} parent=1 // pred_fallthru
      _
    // Predicated region
    $region74: #{ban_forward.1} parent=1 // pred_check
      _
    $region75: #{ban_forward.1} parent=1 // pred_check_branch
      %70 = sbr.rel (0) target = $region77
    $region76: #{ban_forward.1} parent=1 // pred_region
      _
    $region77: #{ban_forward.1} parent=1 // pred_fallthru
      _
    // Predicated region
    $region78: #{ban_forward.1} parent=1 // pred_check
      _
    $region79: #{ban_forward.1} parent=1 // pred_check_branch
      %72 = sbr.rel (0) target = $region81
    $region80: #{ban_forward.1} parent=1 // pred_region
      _
    $region81: #{ban_forward.1} parent=1 // pred_fallthru
      _
    // Predicated region
    $region82: #{ban_forward.1} parent=1 // pred_check
      _
    $region83: #{ban_forward.1} parent=1 // pred_check_branch
      %74 = sbr.rel (0) target = $region85
    $region84: #{ban_forward.1} parent=1 // pred_region
      _
    $region85: #{ban_forward.1} parent=1 // pred_fallthru
      _
    // Predicated region
    $region86: #{ban_forward.1} parent=1 // pred_check
      _
    $region87: #{ban_forward.1} parent=1 // pred_check_branch
      %76 = sbr.rel (0) target = $region89
    $region88: #{ban_forward.1} parent=1 // pred_region
      _
    $region89: #{ban_forward.1} parent=1 // pred_fallthru
      _
    // Predicated region
    $region90: #{ban_forward.1} parent=1 // pred_check
      _
    $region91: #{ban_forward.1} parent=1 // pred_check_branch
      %78 = sbr.rel (0) target = $region93
    $region92: #{ban_forward.1} parent=1 // pred_region
      _
    $region93: #{ban_forward.1} parent=1 // pred_fallthru
      _
    // Predicated region
    $region94: #{ban_forward.1} parent=1 // pred_check
      _
    $region95: #{ban_forward.1} parent=1 // pred_check_branch
      %80 = sbr.rel (0) target = $region97
    $region96: #{ban_forward.1} parent=1 // pred_region
      _
    $region97: #{ban_forward.1} parent=1 // pred_fallthru
      _
    // Predicated region
    $region98: #{ban_forward.1} parent=1 // pred_check
      _
    $region99: #{ban_forward.1} parent=1 // pred_check_branch
      %82 = sbr.rel (0) target = $region101
    $region100: #{ban_forward.1} parent=1 // pred_region
      _
    $region101: #{ban_forward.1} parent=1 // pred_fallthru
      _
    %v84 = vld [vmem:[%s0] sm:$0xf]
    %v85 = vld [vmem:[%s0 + $0x4] sm:$0xf]
    %v86 = vld [vmem:[%s3] sm:$0xf]
    %v87 = vld [vmem:[%s3 + $0x4] sm:$0xf]
    %v88 = vld [vmem:[%s4] sm:$0x1]
    %v90 = vperm.slane %v88, 0
    %v94 = vunpack.c.l.b16 %v84
    %v95 = vunpack.c.l.b16 %v85
    %v96 = vpack.c.b16 %v95, %v94
    %v99 = vunpack.c.l.b16 %v86
    %v100 = vunpack.c.l.b16 %v87
    %v101 = vpack.c.b16 %v100, %v99
    %vm103 = vcmask 130048
    %v105 = vsel %vm103, %v96, 0
    %107 = vmatpush.bf16.msra.mxu0 0
    %108 = vmatpush.bf16.msra.mxu0 0
    %109 = vmatpush.bf16.msra.mxu0 0
    %110 = vmatpush.bf16.msra.mxu0 0
    %111 = vmatpush.bf16.msra.mxu0 0
    %112 = vmatpush.bf16.msra.mxu0 0
    %113 = vmatpush.bf16.msra.mxu0 0
    %114 = vmatpush.bf16.msra.mxu0 %v101
    %115 = vmatmul.bf16.gmra.mxu0 %v105
    %v116 = vpop.f32.mrf.mxu0
    %v117 = vadd.f32 %v90, %v116
    %v118 = vpop.f32.mrf.mxu0
    %v119 = vadd.f32 %v90, %v118
    %120 = vdwg.mxu0
    %v121 = vtanh.pop %v117
    %v122 = vtanh.pop %v119
    %v123 = vld [vmem:[%s1] sm:$0x3]
    %v124 = vld [vmem:[%s1 + $0x2] sm:$0x3]
    %v125 = vld [vmem:[%s5] sm:$0xf]
    %v126 = vld [vmem:[%s5 + $0x4] sm:$0xf]
    %v127 = vld [vmem:[%s6] sm:$0x1]
    %v129 = vperm.slane %v127, 0
    %132 = vst [vmem:[#allocation1] ss:$4 sm:$0xff] %v123
    %s134 = scalar_lea.vmem [#allocation1], 1
    %135 = vst [vmem:[%s134] ss:$4 sm:$0xff] %v124
    %v136 = vld.sshfl [vmem:[#allocation1] sm:$0xff pattern:$0x73625140]
    %v139 = vunpack.c.l.b16 %v125
    %v140 = vunpack.c.l.b16 %v126
    %v141 = vpack.c.b16 %v140, %v139
    %v143 = vsel %vm103, %v136, 0
    %145 = vmatpush.bf16.msra.mxu0 0
    %146 = vmatpush.bf16.msra.mxu0 0
    %147 = vmatpush.bf16.msra.mxu0 0
    %148 = vmatpush.bf16.msra.mxu0 0
    %149 = vmatpush.bf16.msra.mxu0 0
    %150 = vmatpush.bf16.msra.mxu0 0
    %151 = vmatpush.bf16.msra.mxu0 0
    %152 = vmatpush.bf16.msra.mxu0 %v141
    %153 = vmatmul.bf16.gmra.mxu0 %v143
    %v154 = vpop.f32.mrf.mxu0
    %v155 = vadd.f32 %v129, %v154
    %v156 = vpop.f32.mrf.mxu0
    %157 = vdwg.mxu0
    %v158 = vtanh.pop %v155
    %v159 = vld [vmem:[%s2] sm:$0xf]
    %v160 = vld [vmem:[%s2 + $0x4] sm:$0xf]
    %v161 = vld [vmem:[%s7] sm:$0xff]
    %v162 = vld [vmem:[%s7 + $0x8] sm:$0xff]
    %v163 = vld [vmem:[%s7 + $0x10] sm:$0xff]
    %v164 = vld [vmem:[%s7 + $0x18] sm:$0xff]
    %v165 = vld [vmem:[%s8] sm:$0x3]
    %v167 = vperm.slane %v165, 0
    %v168 = vperm.slane %v165, 1
    %v173 = vunpack.c.l.b16 %v159
    %v174 = vunpack.c.l.b16 %v160
    %v175 = vpack.c.b16 %v174, %v173
    %v180 = vunpack.c.l.b16 %v161
    %v181 = vunpack.c.h.b16 %v161
    %v182 = vunpack.c.l.b16 %v162
    %v183 = vunpack.c.h.b16 %v162
    %v184 = vunpack.c.l.b16 %v163
    %v185 = vunpack.c.h.b16 %v163
    %v186 = vunpack.c.l.b16 %v164
    %v187 = vunpack.c.h.b16 %v164
    %v188 = vpack.c.b16 %v182, %v180
    %v189 = vpack.c.b16 %v183, %v181
    %v190 = vpack.c.b16 %v186, %v184
    %v191 = vpack.c.b16 %v187, %v185
    %vm196 = vcmask 261120
    %v198 = vsel %vm196, %v175, 0
    %200 = vmatpush.bf16.msra.mxu0 0
    %201 = vmatpush.bf16.msra.mxu0 0
    %202 = vmatpush.bf16.msra.mxu0 0
    %203 = vmatpush.bf16.msra.mxu0 0
    %204 = vmatpush.bf16.msra.mxu0 0
    %205 = vmatpush.bf16.msra.mxu0 0
    %206 = vmatpush.bf16.msra.mxu0 %v190
    %207 = vmatpush.bf16.msra.mxu0 %v188
    %208 = vmatmul.bf16.gmra.mxu0 %v198
    %v209 = vpop.f32.mrf.mxu0
    %v210 = vadd.f32 %v167, %v209
    %v211 = vpop.f32.mrf.mxu0
    %v212 = vadd.f32 %v167, %v211
    %213 = vdwg.mxu0
    %214 = vmatpush.bf16.msra.mxu0 0
    %215 = vmatpush.bf16.msra.mxu0 0
    %216 = vmatpush.bf16.msra.mxu0 0
    %217 = vmatpush.bf16.msra.mxu0 0
    %218 = vmatpush.bf16.msra.mxu0 0
    %219 = vmatpush.bf16.msra.mxu0 0
    %220 = vmatpush.bf16.msra.mxu0 %v191
    %221 = vmatpush.bf16.msra.mxu0 %v189
    %222 = vmatmul.bf16.gmra.mxu0 %v198
    %v223 = vpop.f32.mrf.mxu0
    %v224 = vadd.f32 %v168, %v223
    %v225 = vpop.f32.mrf.mxu0
    %v226 = vadd.f32 %v168, %v225
    %227 = vdwg.mxu0
    %v228 = vpack.c.bf16 %v210, %v210
    %v229 = vpack.c.bf16 %v212, %v212
    %v230 = vmax.f32 %v224, 0.0
    %v231 = vmax.f32 %v226, 0.0
    %v232 = vpack.c.bf16 %v122, %v121
    %v233 = vld [vmem:[%s9] sm:$0xf]
    %v234 = vld [vmem:[%s9 + $0x4] sm:$0xf]
    %v235 = vld [vmem:[%s9 + $0x8] sm:$0xf]
    %v236 = vld [vmem:[%s9 + $0xc] sm:$0xf]
    %v237 = vld [vmem:[%s10] sm:$0x1]
    %v239 = vperm.slane %v237, 0
    %v245 = vunpack.c.l.b16 %v233
    %v246 = vunpack.c.l.b16 %v234
    %v247 = vunpack.c.l.b16 %v235
    %v248 = vunpack.c.l.b16 %v236
    %v249 = vpack.c.b16 %v246, %v245
    %v250 = vpack.c.b16 %v248, %v247
    %v254 = vsel %vm196, %v232, 0
    %256 = vmatpush.bf16.msra.mxu0 0
    %257 = vmatpush.bf16.msra.mxu0 0
    %258 = vmatpush.bf16.msra.mxu0 0
    %259 = vmatpush.bf16.msra.mxu0 0
    %260 = vmatpush.bf16.msra.mxu0 0
    %261 = vmatpush.bf16.msra.mxu0 0
    %262 = vmatpush.bf16.msra.mxu0 %v250
    %263 = vmatpush.bf16.msra.mxu0 %v249
    %264 = vmatmul.bf16.gmra.mxu0 %v254
    %v265 = vpop.f32.mrf.mxu0
    %v266 = vadd.f32 %v239, %v265
    %v267 = vpop.f32.mrf.mxu0
    %v268 = vadd.f32 %v239, %v267
    %269 = vdwg.mxu0
    %v270 = vpack.c.bf16 %v266, %v266
    %v271 = vpack.c.bf16 %v268, %v268
    %v272 = vpack.c.bf16 %v158, %v158
    %v273 = vld [vmem:[%s11] sm:$0xf]
    %v274 = vld [vmem:[%s11 + $0x4] sm:$0xf]
    %v275 = vld [vmem:[%s11 + $0x8] sm:$0xf]
    %v276 = vld [vmem:[%s11 + $0xc] sm:$0xf]
    %v277 = vld [vmem:[%s12] sm:$0x1]
    %v279 = vperm.slane %v277, 0
    %v285 = vunpack.c.l.b16 %v273
    %v286 = vunpack.c.l.b16 %v274
    %v287 = vunpack.c.l.b16 %v275
    %v288 = vunpack.c.l.b16 %v276
    %v289 = vpack.c.b16 %v286, %v285
    %v290 = vpack.c.b16 %v288, %v287
    %v294 = vsel %vm196, %v272, 0
    %296 = vmatpush.bf16.msra.mxu0 0
    %297 = vmatpush.bf16.msra.mxu0 0
    %298 = vmatpush.bf16.msra.mxu0 0
    %299 = vmatpush.bf16.msra.mxu0 0
    %300 = vmatpush.bf16.msra.mxu0 0
    %301 = vmatpush.bf16.msra.mxu0 0
    %302 = vmatpush.bf16.msra.mxu0 %v290
    %303 = vmatpush.bf16.msra.mxu0 %v289
    %304 = vmatmul.bf16.gmra.mxu0 %v294
    %v305 = vpop.f32.mrf.mxu0
    %v306 = vadd.f32 %v279, %v305
    %v307 = vpop.f32.mrf.mxu0
    %308 = vdwg.mxu0
    %v309 = vpack.c.bf16 %v306, %v306
    %v311 = vrot.slane %v309, 2
    %vm312 = vcmask 1041408
    %v315 = vsel %vm312, %v309, %v311
    %vm316 = vcmask 1043458
    %v317 = vsel %vm316, %v309, %v311
    %v319 = vrot.slane %v317, 2
    %v321 = vsel %vm196, %v228, 0
    %v324 = vsel %vm196, %v270, 0
    %326 = vmatpush.bf16.xpose.msra.mxu0 0
    %327 = vmatpush.bf16.xpose.msra.mxu0 0
    %328 = vmatpush.bf16.xpose.msra.mxu0 0
    %329 = vmatpush.bf16.xpose.msra.mxu0 0
    %330 = vmatpush.bf16.xpose.msra.mxu0 0
    %331 = vmatpush.bf16.xpose.msra.mxu0 0
    %332 = vmatpush.bf16.xpose.msra.mxu0 0
    %333 = vmatpush.bf16.xpose.msra.mxu0 %v324
    %334 = vmatmul.bf16.gmra.mxu0 %v321
    %v335 = vpop.f32.mrf.mxu0
    %v336 = vadd.f32 0.0, %v335
    %v337 = vpop.f32.mrf.mxu0
    %338 = vdwg.mxu0
    %v340 = vsel %vm196, %v229, 0
    %v343 = vsel %vm196, %v271, 0
    %345 = vmatpush.bf16.xpose.msra.mxu0 0
    %346 = vmatpush.bf16.xpose.msra.mxu0 0
    %347 = vmatpush.bf16.xpose.msra.mxu0 0
    %348 = vmatpush.bf16.xpose.msra.mxu0 0
    %349 = vmatpush.bf16.xpose.msra.mxu0 0
    %350 = vmatpush.bf16.xpose.msra.mxu0 0
    %351 = vmatpush.bf16.xpose.msra.mxu0 0
    %352 = vmatpush.bf16.xpose.msra.mxu0 %v343
    %353 = vmatmul.bf16.gmra.mxu0 %v340
    %v354 = vpop.f32.mrf.mxu0
    %v355 = vadd.f32 0.0, %v354
    %v356 = vpop.f32.mrf.mxu0
    %357 = vdwg.mxu0
    %v359 = vunpack.c.l.b16 %v228
    %v360 = vpack.c.b16 %v359, %v359
    %361 = vrot.lane.b32.xlu0 %v360, 64
    %v362 = vpop.permute.xlu0 %361
    %v364 = vsel %vm196, %v362, 0
    %v366 = vsel %vm196, %v315, 0
    %368 = vmatpush.bf16.xpose.msra.mxu0 0
    %369 = vmatpush.bf16.xpose.msra.mxu0 0
    %370 = vmatpush.bf16.xpose.msra.mxu0 0
    %371 = vmatpush.bf16.xpose.msra.mxu0 0
    %372 = vmatpush.bf16.xpose.msra.mxu0 0
    %373 = vmatpush.bf16.xpose.msra.mxu0 0
    %374 = vmatpush.bf16.xpose.msra.mxu0 0
    %375 = vmatpush.bf16.xpose.msra.mxu0 %v366
    %376 = vmatmul.bf16.gmra.mxu0 %v364
    %v377 = vpop.f32.mrf.mxu0
    %v378 = vadd.f32 0.0, %v377
    %v379 = vpop.f32.mrf.mxu0
    %380 = vdwg.mxu0
    %v382 = vunpack.c.l.b16 %v229
    %v383 = vpack.c.b16 %v382, %v382
    %384 = vrot.lane.b32.xlu0 %v383, 64
    %v385 = vpop.permute.xlu0 %384
    %v387 = vsel %vm196, %v385, 0
    %v390 = vsel %vm196, %v319, 0
    %392 = vmatpush.bf16.xpose.msra.mxu0 0
    %393 = vmatpush.bf16.xpose.msra.mxu0 0
    %394 = vmatpush.bf16.xpose.msra.mxu0 0
    %395 = vmatpush.bf16.xpose.msra.mxu0 0
    %396 = vmatpush.bf16.xpose.msra.mxu0 0
    %397 = vmatpush.bf16.xpose.msra.mxu0 0
    %398 = vmatpush.bf16.xpose.msra.mxu0 0
    %399 = vmatpush.bf16.xpose.msra.mxu0 %v390
    %400 = vmatmul.bf16.gmra.mxu0 %v387
    %v401 = vpop.f32.mrf.mxu0
    %v402 = vadd.f32 0.0, %v401
    %v403 = vpop.f32.mrf.mxu0
    %404 = vdwg.mxu0
    %v405 = vrot.slane %v336, 4
    %vm406 = vcmask 1047556
    %v407 = vsel %vm406, 0.0, %v405
    %v409 = vunpack.c.l.s4 1983009808
    %v410 = vunpack.c.0.s8 %v409
    %v411 = vperm.slane %v336, %v410
    %v413 = vunpack.c.l.s4 1983009808
    %v414 = vunpack.c.0.s8 %v413
    %v415 = vperm.slane %v407, %v414
    %v416 = vrot.slane %v355, 4
    %v417 = vsel %vm406, 0.0, %v416
    %v419 = vunpack.c.l.s4 1983009808
    %v420 = vunpack.c.0.s8 %v419
    %v421 = vperm.slane %v355, %v420
    %v423 = vunpack.c.l.s4 1983009808
    %v424 = vunpack.c.0.s8 %v423
    %v425 = vperm.slane %v417, %v424
    %v426 = vrot.slane %v421, 4
    %v427 = vsel %vm406, %v426, %v411
    %v428 = vrot.slane %v411, 4
    %v429 = vsel %vm406, %v421, %v428
    %v431 = vunpack.c.l.s4 1934713408
    %v432 = vunpack.c.0.s8 %v431
    %v433 = vperm.slane %v427, %v432
    %v435 = vunpack.c.l.s4 1934713408
    %v436 = vunpack.c.0.s8 %v435
    %v437 = vperm.slane %v429, %v436
    %v438 = vrot.slane %v425, 4
    %v439 = vsel %vm406, %v438, %v415
    %v440 = vrot.slane %v415, 4
    %v441 = vsel %vm406, %v425, %v440
    %v443 = vunpack.c.l.s4 1934713408
    %v444 = vunpack.c.0.s8 %v443
    %v445 = vperm.slane %v439, %v444
    %v447 = vunpack.c.l.s4 1934713408
    %v448 = vunpack.c.0.s8 %v447
    %v449 = vperm.slane %v441, %v448
    %v450 = vrot.slane %v433, 4
    %v451 = vsel %vm406, 0.0, %v450
    %v452 = vrot.slane %v437, 4
    %v453 = vsel %vm406, 0.0, %v452
    %v454 = vrot.slane %v445, 4
    %v455 = vsel %vm406, 0.0, %v454
    %v456 = vrot.slane %v449, 4
    %v457 = vsel %vm406, 0.0, %v456
    %459 = vrot.lane.b32.xlu0 %v451, 8
    %v460 = vpop.permute.xlu0 %459
    %463 = vrot.lane.b32.xlu0 %v437, 16
    %v464 = vpop.permute.xlu0 %463
    %467 = vrot.lane.b32.xlu0 %v453, 24
    %v468 = vpop.permute.xlu0 %467
    %471 = vrot.lane.b32.xlu0 %v445, 32
    %v472 = vpop.permute.xlu0 %471
    %475 = vrot.lane.b32.xlu0 %v455, 40
    %v476 = vpop.permute.xlu0 %475
    %479 = vrot.lane.b32.xlu0 %v449, 48
    %v480 = vpop.permute.xlu0 %479
    %483 = vrot.lane.b32.xlu0 %v457, 56
    %v484 = vpop.permute.xlu0 %483
    %vm486 = vcmask 64512
    %v487 = vsel %vm486, %v433, %v460
    %v488 = vsel %vm103, %v487, %v464
    %vm489 = vcmask 195584
    %v490 = vsel %vm489, %v488, %v468
    %v491 = vsel %vm196, %v490, %v472
    %vm492 = vcmask 326656
    %v493 = vsel %vm492, %v491, %v476
    %vm494 = vcmask 392192
    %v495 = vsel %vm494, %v493, %v480
    %vm496 = vcmask 457728
    %v497 = vsel %vm496, %v495, %v484
    %vm498 = vcmask 517120
    %v499 = vsel %vm498, %v497, -inf
    %500 = vmax.xlane.f32.xlu0 %v499
    %v501 = vpop.xlane.xlu0 %500
    %v502 = vsub.f32 %v497, %v501
    %v503 = vmul.f32 %v502, 1.442695
    %v504 = vpow.pop %v503
    %v505 = vsel %vm498, %v504, 0.0
    %506 = vadd.xlane.f32.xlu0 %v505
    %v507 = vpop.xlane.xlu0 %506
    %v508 = vrcp.pop %v507
    %v509 = vmul.f32 %v504, %v508
    %511 = vrot.lane.b32.xlu0 %v509, 120
    %v512 = vpop.permute.xlu0 %511
    %514 = vrot.lane.b32.xlu0 %v509, 112
    %v515 = vpop.permute.xlu0 %514
    %517 = vrot.lane.b32.xlu0 %v509, 104
    %v518 = vpop.permute.xlu0 %517
    %520 = vrot.lane.b32.xlu0 %v509, 96
    %v521 = vpop.permute.xlu0 %520
    %523 = vrot.lane.b32.xlu0 %v509, 88
    %v524 = vpop.permute.xlu0 %523
    %526 = vrot.lane.b32.xlu0 %v509, 80
    %v527 = vpop.permute.xlu0 %526
    %529 = vrot.lane.b32.xlu0 %v509, 72
    %v530 = vpop.permute.xlu0 %529
    %v532 = vrot.slane %v515, 4
    %v533 = vsel %vm406, %v532, %v509
    %v535 = vunpack.c.l.s4 1983009808
    %v536 = vunpack.c.0.s8 %v535
    %v537 = vperm.slane %v533, %v536
    %v538 = vrot.slane %v518, 4
    %v539 = vsel %vm406, %v538, %v512
    %v541 = vunpack.c.l.s4 1983009808
    %v542 = vunpack.c.0.s8 %v541
    %v543 = vperm.slane %v539, %v542
    %v544 = vrot.slane %v527, 4
    %v545 = vsel %vm406, %v544, %v521
    %v547 = vunpack.c.l.s4 1983009808
    %v548 = vunpack.c.0.s8 %v547
    %v549 = vperm.slane %v545, %v548
    %v550 = vrot.slane %v530, 4
    %v551 = vsel %vm406, %v550, %v524
    %v553 = vunpack.c.l.s4 1983009808
    %v554 = vunpack.c.0.s8 %v553
    %v555 = vperm.slane %v551, %v554
    %v556 = vrot.slane %v543, 4
    %v557 = vsel %vm406, %v556, %v537
    %v559 = vunpack.c.l.s4 1934713408
    %v560 = vunpack.c.0.s8 %v559
    %v561 = vperm.slane %v557, %v560
    %v562 = vrot.slane %v555, 4
    %v563 = vsel %vm406, %v562, %v549
    %v565 = vunpack.c.l.s4 1934713408
    %v566 = vunpack.c.0.s8 %v565
    %v567 = vperm.slane %v563, %v566
    %v568 = vrot.slane %v567, 4
    %v569 = vsel %vm406, %v568, %v561
    %v570 = vrot.slane %v561, 4
    %v571 = vsel %vm406, %v567, %v570
    %v572 = vrot.slane %v378, 4
    %v573 = vsel %vm406, 0.0, %v572
    %v575 = vunpack.c.l.s4 1983009808
    %v576 = vunpack.c.0.s8 %v575
    %v577 = vperm.slane %v378, %v576
    %v579 = vunpack.c.l.s4 1983009808
    %v580 = vunpack.c.0.s8 %v579
    %v581 = vperm.slane %v573, %v580
    %v582 = vrot.slane %v402, 4
    %v583 = vsel %vm406, 0.0, %v582
    %v585 = vunpack.c.l.s4 1983009808
    %v586 = vunpack.c.0.s8 %v585
    %v587 = vperm.slane %v402, %v586
    %v589 = vunpack.c.l.s4 1983009808
    %v590 = vunpack.c.0.s8 %v589
    %v591 = vperm.slane %v583, %v590
    %v592 = vrot.slane %v587, 4
    %v593 = vsel %vm406, %v592, %v577
    %v594 = vrot.slane %v577, 4
    %v595 = vsel %vm406, %v587, %v594
    %v597 = vunpack.c.l.s4 1934713408
    %v598 = vunpack.c.0.s8 %v597
    %v599 = vperm.slane %v593, %v598
    %v601 = vunpack.c.l.s4 1934713408
    %v602 = vunpack.c.0.s8 %v601
    %v603 = vperm.slane %v595, %v602
    %v604 = vrot.slane %v591, 4
    %v605 = vsel %vm406, %v604, %v581
    %v606 = vrot.slane %v581, 4
    %v607 = vsel %vm406, %v591, %v606
    %v609 = vunpack.c.l.s4 1934713408
    %v610 = vunpack.c.0.s8 %v609
    %v611 = vperm.slane %v605, %v610
    %v613 = vunpack.c.l.s4 1934713408
    %v614 = vunpack.c.0.s8 %v613
    %v615 = vperm.slane %v607, %v614
    %v616 = vrot.slane %v599, 4
    %v617 = vsel %vm406, 0.0, %v616
    %v618 = vrot.slane %v603, 4
    %v619 = vsel %vm406, 0.0, %v618
    %v620 = vrot.slane %v611, 4
    %v621 = vsel %vm406, 0.0, %v620
    %v622 = vrot.slane %v615, 4
    %v623 = vsel %vm406, 0.0, %v622
    %625 = vrot.lane.b32.xlu0 %v617, 4
    %v626 = vpop.permute.xlu0 %625
    %629 = vrot.lane.b32.xlu0 %v603, 8
    %v630 = vpop.permute.xlu0 %629
    %633 = vrot.lane.b32.xlu0 %v619, 12
    %v634 = vpop.permute.xlu0 %633
    %637 = vrot.lane.b32.xlu0 %v611, 16
    %v638 = vpop.permute.xlu0 %637
    %641 = vrot.lane.b32.xlu0 %v621, 20
    %v642 = vpop.permute.xlu0 %641
    %645 = vrot.lane.b32.xlu0 %v615, 24
    %v646 = vpop.permute.xlu0 %645
    %649 = vrot.lane.b32.xlu0 %v623, 28
    %v650 = vpop.permute.xlu0 %649
    %vm652 = vcmask 31744
    %v653 = vsel %vm652, %v599, %v626
    %v654 = vsel %vm486, %v653, %v630
    %vm655 = vcmask 97280
    %v656 = vsel %vm655, %v654, %v634
    %v657 = vsel %vm103, %v656, %v638
    %vm658 = vcmask 162816
    %v659 = vsel %vm658, %v657, %v642
    %v660 = vsel %vm489, %v659, %v646
    %vm661 = vcmask 228352
    %v662 = vsel %vm661, %v660, %v650
    %vm663 = vcmask 254976
    %v664 = vsel %vm663, %v662, -inf
    %665 = vmax.xlane.f32.xlu0 %v664
    %v666 = vpop.xlane.xlu0 %665
    %v667 = vsub.f32 %v662, %v666
    %v668 = vmul.f32 %v667, 1.442695
    %v669 = vpow.pop %v668
    %v670 = vsel %vm663, %v669, 0.0
    %671 = vadd.xlane.f32.xlu0 %v670
    %v672 = vpop.xlane.xlu0 %671
    %v673 = vrcp.pop %v672
    %v674 = vmul.f32 %v669, %v673
    %676 = vrot.lane.b32.xlu0 %v674, 124
    %v677 = vpop.permute.xlu0 %676
    %679 = vrot.lane.b32.xlu0 %v674, 120
    %v680 = vpop.permute.xlu0 %679
    %682 = vrot.lane.b32.xlu0 %v674, 116
    %v683 = vpop.permute.xlu0 %682
    %685 = vrot.lane.b32.xlu0 %v674, 112
    %v686 = vpop.permute.xlu0 %685
    %688 = vrot.lane.b32.xlu0 %v674, 108
    %v689 = vpop.permute.xlu0 %688
    %691 = vrot.lane.b32.xlu0 %v674, 104
    %v692 = vpop.permute.xlu0 %691
    %694 = vrot.lane.b32.xlu0 %v674, 100
    %v695 = vpop.permute.xlu0 %694
    %v697 = vrot.slane %v680, 4
    %v698 = vsel %vm406, %v697, %v674
    %v700 = vunpack.c.l.s4 1983009808
    %v701 = vunpack.c.0.s8 %v700
    %v702 = vperm.slane %v698, %v701
    %v703 = vrot.slane %v683, 4
    %v704 = vsel %vm406, %v703, %v677
    %v706 = vunpack.c.l.s4 1983009808
    %v707 = vunpack.c.0.s8 %v706
    %v708 = vperm.slane %v704, %v707
    %v709 = vrot.slane %v692, 4
    %v710 = vsel %vm406, %v709, %v686
    %v712 = vunpack.c.l.s4 1983009808
    %v713 = vunpack.c.0.s8 %v712
    %v714 = vperm.slane %v710, %v713
    %v715 = vrot.slane %v695, 4
    %v716 = vsel %vm406, %v715, %v689
    %v718 = vunpack.c.l.s4 1983009808
    %v719 = vunpack.c.0.s8 %v718
    %v720 = vperm.slane %v716, %v719
    %v721 = vrot.slane %v708, 4
    %v722 = vsel %vm406, %v721, %v702
    %v724 = vunpack.c.l.s4 1934713408
    %v725 = vunpack.c.0.s8 %v724
    %v726 = vperm.slane %v722, %v725
    %v727 = vrot.slane %v720, 4
    %v728 = vsel %vm406, %v727, %v714
    %v730 = vunpack.c.l.s4 1934713408
    %v731 = vunpack.c.0.s8 %v730
    %v732 = vperm.slane %v728, %v731
    %v733 = vrot.slane %v732, 4
    %v734 = vsel %vm406, %v733, %v726
    %v735 = vrot.slane %v726, 4
    %v736 = vsel %vm406, %v732, %v735
    %737 = vrot.lane.b32.xlu0 %v360, 96
    %v738 = vpop.permute.xlu0 %737
    %v740 = vunpack.c.l.b16 %v270
    %v741 = vpack.c.b16 %v740, %v740
    %742 = vrot.lane.b32.xlu0 %v741, 96
    %v743 = vpop.permute.xlu0 %742
    %v745 = vsel %vm196, %v738, 0
    %v748 = vsel %vm196, %v743, 0
    %750 = vmatpush.bf16.xpose.msra.mxu0 0
    %751 = vmatpush.bf16.xpose.msra.mxu0 0
    %752 = vmatpush.bf16.xpose.msra.mxu0 0
    %753 = vmatpush.bf16.xpose.msra.mxu0 0
    %754 = vmatpush.bf16.xpose.msra.mxu0 0
    %755 = vmatpush.bf16.xpose.msra.mxu0 0
    %756 = vmatpush.bf16.xpose.msra.mxu0 0
    %757 = vmatpush.bf16.xpose.msra.mxu0 %v748
    %758 = vmatmul.bf16.gmra.mxu0 %v745
    %v759 = vpop.f32.mrf.mxu0
    %v760 = vadd.f32 0.0, %v759
    %v761 = vpop.f32.mrf.mxu0
    %762 = vdwg.mxu0
    %763 = vrot.lane.b32.xlu0 %v383, 96
    %v764 = vpop.permute.xlu0 %763
    %v766 = vunpack.c.l.b16 %v271
    %v767 = vpack.c.b16 %v766, %v766
    %768 = vrot.lane.b32.xlu0 %v767, 96
    %v769 = vpop.permute.xlu0 %768
    %v771 = vsel %vm196, %v764, 0
    %v774 = vsel %vm196, %v769, 0
    %776 = vmatpush.bf16.xpose.msra.mxu0 0
    %777 = vmatpush.bf16.xpose.msra.mxu0 0
    %778 = vmatpush.bf16.xpose.msra.mxu0 0
    %779 = vmatpush.bf16.xpose.msra.mxu0 0
    %780 = vmatpush.bf16.xpose.msra.mxu0 0
    %781 = vmatpush.bf16.xpose.msra.mxu0 0
    %782 = vmatpush.bf16.xpose.msra.mxu0 0
    %783 = vmatpush.bf16.xpose.msra.mxu0 %v774
    %784 = vmatmul.bf16.gmra.mxu0 %v771
    %v785 = vpop.f32.mrf.mxu0
    %v786 = vadd.f32 0.0, %v785
    %v787 = vpop.f32.mrf.mxu0
    %788 = vdwg.mxu0
    %789 = vrot.lane.b32.xlu0 %v360, 32
    %v790 = vpop.permute.xlu0 %789
    %791 = vst [vmem:[#allocation1] ss:$4 sm:$0xff] %v315
    %v792 = vld.sshfl [vmem:[#allocation1] sm:$0xff pattern:$0x73625140]
    %794 = vrot.lane.b32.xlu0 %v792, 96
    %v795 = vpop.permute.xlu0 %794
    %v797 = vsel %vm196, %v790, 0
    %v800 = vsel %vm196, %v795, 0
    %802 = vmatpush.bf16.xpose.msra.mxu0 0
    %803 = vmatpush.bf16.xpose.msra.mxu0 0
    %804 = vmatpush.bf16.xpose.msra.mxu0 0
    %805 = vmatpush.bf16.xpose.msra.mxu0 0
    %806 = vmatpush.bf16.xpose.msra.mxu0 0
    %807 = vmatpush.bf16.xpose.msra.mxu0 0
    %808 = vmatpush.bf16.xpose.msra.mxu0 0
    %809 = vmatpush.bf16.xpose.msra.mxu0 %v800
    %810 = vmatmul.bf16.gmra.mxu0 %v797
    %v811 = vpop.f32.mrf.mxu0
    %v812 = vadd.f32 0.0, %v811
    %v813 = vpop.f32.mrf.mxu0
    %814 = vdwg.mxu0
    %815 = vrot.lane.b32.xlu0 %v383, 32
    %v816 = vpop.permute.xlu0 %815
    %817 = vst [vmem:[#allocation1] ss:$4 sm:$0xff] %v319
    %v818 = vld.sshfl [vmem:[#allocation1] sm:$0xff pattern:$0x73625140]
    %820 = vrot.lane.b32.xlu0 %v818, 96
    %v821 = vpop.permute.xlu0 %820
    %v823 = vsel %vm196, %v816, 0
    %v826 = vsel %vm196, %v821, 0
    %828 = vmatpush.bf16.xpose.msra.mxu0 0
    %829 = vmatpush.bf16.xpose.msra.mxu0 0
    %830 = vmatpush.bf16.xpose.msra.mxu0 0
    %831 = vmatpush.bf16.xpose.msra.mxu0 0
    %832 = vmatpush.bf16.xpose.msra.mxu0 0
    %833 = vmatpush.bf16.xpose.msra.mxu0 0
    %834 = vmatpush.bf16.xpose.msra.mxu0 0
    %835 = vmatpush.bf16.xpose.msra.mxu0 %v826
    %836 = vmatmul.bf16.gmra.mxu0 %v823
    %v837 = vpop.f32.mrf.mxu0
    %v838 = vadd.f32 0.0, %v837
    %v839 = vpop.f32.mrf.mxu0
    %840 = vdwg.mxu0
    %v841 = vrot.slane %v760, 4
    %v842 = vsel %vm406, 0.0, %v841
    %v844 = vunpack.c.l.s4 1983009808
    %v845 = vunpack.c.0.s8 %v844
    %v846 = vperm.slane %v760, %v845
    %v848 = vunpack.c.l.s4 1983009808
    %v849 = vunpack.c.0.s8 %v848
    %v850 = vperm.slane %v842, %v849
    %v851 = vrot.slane %v786, 4
    %v852 = vsel %vm406, 0.0, %v851
    %v854 = vunpack.c.l.s4 1983009808
    %v855 = vunpack.c.0.s8 %v854
    %v856 = vperm.slane %v786, %v855
    %v858 = vunpack.c.l.s4 1983009808
    %v859 = vunpack.c.0.s8 %v858
    %v860 = vperm.slane %v852, %v859
    %v861 = vrot.slane %v856, 4
    %v862 = vsel %vm406, %v861, %v846
    %v863 = vrot.slane %v846, 4
    %v864 = vsel %vm406, %v856, %v863
    %v866 = vunpack.c.l.s4 1934713408
    %v867 = vunpack.c.0.s8 %v866
    %v868 = vperm.slane %v862, %v867
    %v870 = vunpack.c.l.s4 1934713408
    %v871 = vunpack.c.0.s8 %v870
    %v872 = vperm.slane %v864, %v871
    %v873 = vrot.slane %v860, 4
    %v874 = vsel %vm406, %v873, %v850
    %v875 = vrot.slane %v850, 4
    %v876 = vsel %vm406, %v860, %v875
    %v878 = vunpack.c.l.s4 1934713408
    %v879 = vunpack.c.0.s8 %v878
    %v880 = vperm.slane %v874, %v879
    %v882 = vunpack.c.l.s4 1934713408
    %v883 = vunpack.c.0.s8 %v882
    %v884 = vperm.slane %v876, %v883
    %v885 = vrot.slane %v868, 4
    %v886 = vsel %vm406, 0.0, %v885
    %v887 = vrot.slane %v872, 4
    %v888 = vsel %vm406, 0.0, %v887
    %v889 = vrot.slane %v880, 4
    %v890 = vsel %vm406, 0.0, %v889
    %v891 = vrot.slane %v884, 4
    %v892 = vsel %vm406, 0.0, %v891
    %894 = vrot.lane.b32.xlu0 %v886, 8
    %v895 = vpop.permute.xlu0 %894
    %898 = vrot.lane.b32.xlu0 %v872, 16
    %v899 = vpop.permute.xlu0 %898
    %902 = vrot.lane.b32.xlu0 %v888, 24
    %v903 = vpop.permute.xlu0 %902
    %906 = vrot.lane.b32.xlu0 %v880, 32
    %v907 = vpop.permute.xlu0 %906
    %910 = vrot.lane.b32.xlu0 %v890, 40
    %v911 = vpop.permute.xlu0 %910
    %914 = vrot.lane.b32.xlu0 %v884, 48
    %v915 = vpop.permute.xlu0 %914
    %918 = vrot.lane.b32.xlu0 %v892, 56
    %v919 = vpop.permute.xlu0 %918
    %v921 = vsel %vm486, %v868, %v895
    %v922 = vsel %vm103, %v921, %v899
    %v923 = vsel %vm489, %v922, %v903
    %v924 = vsel %vm196, %v923, %v907
    %v925 = vsel %vm492, %v924, %v911
    %v926 = vsel %vm494, %v925, %v915
    %v927 = vsel %vm496, %v926, %v919
    %v928 = vsel %vm498, %v927, -inf
    %929 = vmax.xlane.f32.xlu0 %v928
    %v930 = vpop.xlane.xlu0 %929
    %v931 = vsub.f32 %v927, %v930
    %v932 = vmul.f32 %v931, 1.442695
    %v933 = vpow.pop %v932
    %v934 = vsel %vm498, %v933, 0.0
    %935 = vadd.xlane.f32.xlu0 %v934
    %v936 = vpop.xlane.xlu0 %935
    %v937 = vrcp.pop %v936
    %v938 = vmul.f32 %v933, %v937
    %940 = vrot.lane.b32.xlu0 %v938, 120
    %v941 = vpop.permute.xlu0 %940
    %943 = vrot.lane.b32.xlu0 %v938, 112
    %v944 = vpop.permute.xlu0 %943
    %946 = vrot.lane.b32.xlu0 %v938, 104
    %v947 = vpop.permute.xlu0 %946
    %949 = vrot.lane.b32.xlu0 %v938, 96
    %v950 = vpop.permute.xlu0 %949
    %952 = vrot.lane.b32.xlu0 %v938, 88
    %v953 = vpop.permute.xlu0 %952
    %955 = vrot.lane.b32.xlu0 %v938, 80
    %v956 = vpop.permute.xlu0 %955
    %958 = vrot.lane.b32.xlu0 %v938, 72
    %v959 = vpop.permute.xlu0 %958
    %v961 = vrot.slane %v944, 4
    %v962 = vsel %vm406, %v961, %v938
    %v964 = vunpack.c.l.s4 1983009808
    %v965 = vunpack.c.0.s8 %v964
    %v966 = vperm.slane %v962, %v965
    %v967 = vrot.slane %v947, 4
    %v968 = vsel %vm406, %v967, %v941
    %v970 = vunpack.c.l.s4 1983009808
    %v971 = vunpack.c.0.s8 %v970
    %v972 = vperm.slane %v968, %v971
    %v973 = vrot.slane %v956, 4
    %v974 = vsel %vm406, %v973, %v950
    %v976 = vunpack.c.l.s4 1983009808
    %v977 = vunpack.c.0.s8 %v976
    %v978 = vperm.slane %v974, %v977
    %v979 = vrot.slane %v959, 4
    %v980 = vsel %vm406, %v979, %v953
    %v982 = vunpack.c.l.s4 1983009808
    %v983 = vunpack.c.0.s8 %v982
    %v984 = vperm.slane %v980, %v983
    %v985 = vrot.slane %v972, 4
    %v986 = vsel %vm406, %v985, %v966
    %v988 = vunpack.c.l.s4 1934713408
    %v989 = vunpack.c.0.s8 %v988
    %v990 = vperm.slane %v986, %v989
    %v991 = vrot.slane %v984, 4
    %v992 = vsel %vm406, %v991, %v978
    %v994 = vunpack.c.l.s4 1934713408
    %v995 = vunpack.c.0.s8 %v994
    %v996 = vperm.slane %v992, %v995
    %v997 = vrot.slane %v996, 4
    %v998 = vsel %vm406, %v997, %v990
    %v999 = vrot.slane %v990, 4
    %v1000 = vsel %vm406, %v996, %v999
    %v1001 = vrot.slane %v812, 4
    %v1002 = vsel %vm406, 0.0, %v1001
    %v1004 = vunpack.c.l.s4 1983009808
    %v1005 = vunpack.c.0.s8 %v1004
    %v1006 = vperm.slane %v812, %v1005
    %v1008 = vunpack.c.l.s4 1983009808
    %v1009 = vunpack.c.0.s8 %v1008
    %v1010 = vperm.slane %v1002, %v1009
    %v1011 = vrot.slane %v838, 4
    %v1012 = vsel %vm406, 0.0, %v1011
    %v1014 = vunpack.c.l.s4 1983009808
    %v1015 = vunpack.c.0.s8 %v1014
    %v1016 = vperm.slane %v838, %v1015
    %v1018 = vunpack.c.l.s4 1983009808
    %v1019 = vunpack.c.0.s8 %v1018
    %v1020 = vperm.slane %v1012, %v1019
    %v1021 = vrot.slane %v1016, 4
    %v1022 = vsel %vm406, %v1021, %v1006
    %v1023 = vrot.slane %v1006, 4
    %v1024 = vsel %vm406, %v1016, %v1023
    %v1026 = vunpack.c.l.s4 1934713408
    %v1027 = vunpack.c.0.s8 %v1026
    %v1028 = vperm.slane %v1022, %v1027
    %v1030 = vunpack.c.l.s4 1934713408
    %v1031 = vunpack.c.0.s8 %v1030
    %v1032 = vperm.slane %v1024, %v1031
    %v1033 = vrot.slane %v1020, 4
    %v1034 = vsel %vm406, %v1033, %v1010
    %v1035 = vrot.slane %v1010, 4
    %v1036 = vsel %vm406, %v1020, %v1035
    %v1038 = vunpack.c.l.s4 1934713408
    %v1039 = vunpack.c.0.s8 %v1038
    %v1040 = vperm.slane %v1034, %v1039
    %v1042 = vunpack.c.l.s4 1934713408
    %v1043 = vunpack.c.0.s8 %v1042
    %v1044 = vperm.slane %v1036, %v1043
    %v1045 = vrot.slane %v1028, 4
    %v1046 = vsel %vm406, 0.0, %v1045
    %v1047 = vrot.slane %v1032, 4
    %v1048 = vsel %vm406, 0.0, %v1047
    %v1049 = vrot.slane %v1040, 4
    %v1050 = vsel %vm406, 0.0, %v1049
    %v1051 = vrot.slane %v1044, 4
    %v1052 = vsel %vm406, 0.0, %v1051
    %1054 = vrot.lane.b32.xlu0 %v1046, 4
    %v1055 = vpop.permute.xlu0 %1054
    %1058 = vrot.lane.b32.xlu0 %v1032, 8
    %v1059 = vpop.permute.xlu0 %1058
    %1062 = vrot.lane.b32.xlu0 %v1048, 12
    %v1063 = vpop.permute.xlu0 %1062
    %1066 = vrot.lane.b32.xlu0 %v1040, 16
    %v1067 = vpop.permute.xlu0 %1066
    %1070 = vrot.lane.b32.xlu0 %v1050, 20
    %v1071 = vpop.permute.xlu0 %1070
    %1074 = vrot.lane.b32.xlu0 %v1044, 24
    %v1075 = vpop.permute.xlu0 %1074
    %1078 = vrot.lane.b32.xlu0 %v1052, 28
    %v1079 = vpop.permute.xlu0 %1078
    %v1081 = vsel %vm652, %v1028, %v1055
    %v1082 = vsel %vm486, %v1081, %v1059
    %v1083 = vsel %vm655, %v1082, %v1063
    %v1084 = vsel %vm103, %v1083, %v1067
    %v1085 = vsel %vm658, %v1084, %v1071
    %v1086 = vsel %vm489, %v1085, %v1075
    %v1087 = vsel %vm661, %v1086, %v1079
    %v1088 = vsel %vm663, %v1087, -inf
    %1089 = vmax.xlane.f32.xlu0 %v1088
    %v1090 = vpop.xlane.xlu0 %1089
    %v1091 = vsub.f32 %v1087, %v1090
    %v1092 = vmul.f32 %v1091, 1.442695
    %v1093 = vpow.pop %v1092
    %v1094 = vsel %vm663, %v1093, 0.0
    %1095 = vadd.xlane.f32.xlu0 %v1094
    %v1096 = vpop.xlane.xlu0 %1095
    %v1097 = vrcp.pop %v1096
    %v1098 = vmul.f32 %v1093, %v1097
    %1100 = vrot.lane.b32.xlu0 %v1098, 124
    %v1101 = vpop.permute.xlu0 %1100
    %1103 = vrot.lane.b32.xlu0 %v1098, 120
    %v1104 = vpop.permute.xlu0 %1103
    %1106 = vrot.lane.b32.xlu0 %v1098, 116
    %v1107 = vpop.permute.xlu0 %1106
    %1109 = vrot.lane.b32.xlu0 %v1098, 112
    %v1110 = vpop.permute.xlu0 %1109
    %1112 = vrot.lane.b32.xlu0 %v1098, 108
    %v1113 = vpop.permute.xlu0 %1112
    %1115 = vrot.lane.b32.xlu0 %v1098, 104
    %v1116 = vpop.permute.xlu0 %1115
    %1118 = vrot.lane.b32.xlu0 %v1098, 100
    %v1119 = vpop.permute.xlu0 %1118
    %v1121 = vrot.slane %v1104, 4
    %v1122 = vsel %vm406, %v1121, %v1098
    %v1124 = vunpack.c.l.s4 1983009808
    %v1125 = vunpack.c.0.s8 %v1124
    %v1126 = vperm.slane %v1122, %v1125
    %v1127 = vrot.slane %v1107, 4
    %v1128 = vsel %vm406, %v1127, %v1101
    %v1130 = vunpack.c.l.s4 1983009808
    %v1131 = vunpack.c.0.s8 %v1130
    %v1132 = vperm.slane %v1128, %v1131
    %v1133 = vrot.slane %v1116, 4
    %v1134 = vsel %vm406, %v1133, %v1110
    %v1136 = vunpack.c.l.s4 1983009808
    %v1137 = vunpack.c.0.s8 %v1136
    %v1138 = vperm.slane %v1134, %v1137
    %v1139 = vrot.slane %v1119, 4
    %v1140 = vsel %vm406, %v1139, %v1113
    %v1142 = vunpack.c.l.s4 1983009808
    %v1143 = vunpack.c.0.s8 %v1142
    %v1144 = vperm.slane %v1140, %v1143
    %v1145 = vrot.slane %v1132, 4
    %v1146 = vsel %vm406, %v1145, %v1126
    %v1148 = vunpack.c.l.s4 1934713408
    %v1149 = vunpack.c.0.s8 %v1148
    %v1150 = vperm.slane %v1146, %v1149
    %v1151 = vrot.slane %v1144, 4
    %v1152 = vsel %vm406, %v1151, %v1138
    %v1154 = vunpack.c.l.s4 1934713408
    %v1155 = vunpack.c.0.s8 %v1154
    %v1156 = vperm.slane %v1152, %v1155
    %v1157 = vrot.slane %v1156, 4
    %v1158 = vsel %vm406, %v1157, %v1150
    %v1159 = vrot.slane %v1150, 4
    %v1160 = vsel %vm406, %v1156, %v1159
    %1161 = vrot.lane.b32.xlu0 %v938, 64
    %v1162 = vpop.permute.xlu0 %1161
    %vm1164 = vcmask 523264
    %v1165 = vsel %vm1164, %v509, %v1162
    %1166 = vst [vmem:[%s26] sm:$0x3] %v1165
    %v1167 = vld [vmem:[%s13] sm:$0xf]
    %v1168 = vld [vmem:[%s13 + $0x4] sm:$0xf]
    %v1169 = vld [vmem:[%s13 + $0x8] sm:$0xf]
    %v1170 = vld [vmem:[%s13 + $0xc] sm:$0xf]
    %v1171 = vld [vmem:[%s14] sm:$0x1]
    %v1173 = vperm.slane %v1171, 0
    %v1179 = vunpack.c.l.b16 %v1167
    %v1180 = vunpack.c.l.b16 %v1168
    %v1181 = vunpack.c.l.b16 %v1169
    %v1182 = vunpack.c.l.b16 %v1170
    %v1183 = vpack.c.b16 %v1180, %v1179
    %v1184 = vpack.c.b16 %v1182, %v1181
    %1187 = vmatpush.bf16.msra.mxu0 0
    %1188 = vmatpush.bf16.msra.mxu0 0
    %1189 = vmatpush.bf16.msra.mxu0 0
    %1190 = vmatpush.bf16.msra.mxu0 0
    %1191 = vmatpush.bf16.msra.mxu0 0
    %1192 = vmatpush.bf16.msra.mxu0 0
    %1193 = vmatpush.bf16.msra.mxu0 %v1184
    %1194 = vmatpush.bf16.msra.mxu0 %v1183
    %1195 = vmatmul.bf16.gmra.mxu0 %v254
    %v1196 = vpop.f32.mrf.mxu0
    %v1197 = vadd.f32 %v1173, %v1196
    %v1198 = vpop.f32.mrf.mxu0
    %v1199 = vadd.f32 %v1173, %v1198
    %1200 = vdwg.mxu0
    %v1201 = vmax.f32 %v1197, 0.0
    %v1202 = vmax.f32 %v1199, 0.0
    %v1203 = vld [vmem:[%s15] sm:$0xf]
    %v1204 = vld [vmem:[%s15 + $0x4] sm:$0xf]
    %v1205 = vld [vmem:[%s15 + $0x8] sm:$0xf]
    %v1206 = vld [vmem:[%s15 + $0xc] sm:$0xf]
    %v1207 = vld [vmem:[%s16] sm:$0x1]
    %v1209 = vperm.slane %v1207, 0
    %v1215 = vunpack.c.l.b16 %v1203
    %v1216 = vunpack.c.l.b16 %v1204
    %v1217 = vunpack.c.l.b16 %v1205
    %v1218 = vunpack.c.l.b16 %v1206
    %v1219 = vpack.c.b16 %v1216, %v1215
    %v1220 = vpack.c.b16 %v1218, %v1217
    %1223 = vmatpush.bf16.msra.mxu0 0
    %1224 = vmatpush.bf16.msra.mxu0 0
    %1225 = vmatpush.bf16.msra.mxu0 0
    %1226 = vmatpush.bf16.msra.mxu0 0
    %1227 = vmatpush.bf16.msra.mxu0 0
    %1228 = vmatpush.bf16.msra.mxu0 0
    %1229 = vmatpush.bf16.msra.mxu0 %v1220
    %1230 = vmatpush.bf16.msra.mxu0 %v1219
    %1231 = vmatmul.bf16.gmra.mxu0 %v294
    %v1232 = vpop.f32.mrf.mxu0
    %v1233 = vadd.f32 %v1209, %v1232
    %v1234 = vpop.f32.mrf.mxu0
    %1235 = vdwg.mxu0
    %v1236 = vmax.f32 %v1233, 0.0
    %v1238 = vrot.slane %v1236, 4
    %v1240 = vpack.c.bf16 %v569, %v569
    %v1241 = vpack.c.bf16 %v571, %v571
    %v1242 = vpack.c.bf16 %v1201, %v1201
    %v1243 = vpack.c.bf16 %v1202, %v1202
    %v1245 = vsel %vm486, %v1240, 0
    %vm1247 = vcmask 1043456
    %v1249 = vsel %vm1247, %v1242, 0
    %1251 = vmatpush.bf16.msra.mxu0 0
    %1252 = vmatpush.bf16.msra.mxu0 0
    %1253 = vmatpush.bf16.msra.mxu0 0
    %1254 = vmatpush.bf16.msra.mxu0 0
    %1255 = vmatpush.bf16.msra.mxu0 0
    %1256 = vmatpush.bf16.msra.mxu0 0
    %1257 = vmatpush.bf16.msra.mxu0 0
    %1258 = vmatpush.bf16.msra.mxu0 %v1249
    %1259 = vmatmul.bf16.gmra.mxu0 %v1245
    %v1260 = vpop.f32.mrf.mxu0
    %v1261 = vadd.f32 0.0, %v1260
    %v1262 = vpop.f32.mrf.mxu0
    %1263 = vdwg.mxu0
    %v1265 = vsel %vm486, %v1241, 0
    %v1268 = vsel %vm1247, %v1243, 0
    %1270 = vmatpush.bf16.msra.mxu0 0
    %1271 = vmatpush.bf16.msra.mxu0 0
    %1272 = vmatpush.bf16.msra.mxu0 0
    %1273 = vmatpush.bf16.msra.mxu0 0
    %1274 = vmatpush.bf16.msra.mxu0 0
    %1275 = vmatpush.bf16.msra.mxu0 0
    %1276 = vmatpush.bf16.msra.mxu0 0
    %1277 = vmatpush.bf16.msra.mxu0 %v1268
    %1278 = vmatmul.bf16.gmra.mxu0 %v1265
    %v1279 = vpop.f32.mrf.mxu0
    %v1280 = vadd.f32 0.0, %v1279
    %v1281 = vpop.f32.mrf.mxu0
    %1282 = vdwg.mxu0
    %v1283 = vmul.f32 %v230, %v1261
    %v1284 = vmul.f32 %v231, %v1280
    %v1285 = vsel %vm196, %v1283, 0.0
    %v1286 = vrot.slane %v1285, 4
    %v1287 = vadd.f32 %v1285, %v1286
    %v1288 = vrot.slane %v1287, 2
    %v1289 = vadd.f32 %v1287, %v1288
    %v1290 = vrot.slane %v1289, 1
    %v1291 = vadd.f32 %v1289, %v1290
    %v1292 = vsel %vm196, %v1284, 0.0
    %v1293 = vrot.slane %v1292, 4
    %v1294 = vadd.f32 %v1292, %v1293
    %v1295 = vrot.slane %v1294, 2
    %v1296 = vadd.f32 %v1294, %v1295
    %v1297 = vrot.slane %v1296, 1
    %v1298 = vadd.f32 %v1296, %v1297
    %v1299 = vpack.c.bf16 %v734, %v734
    %v1300 = vpack.c.bf16 %v736, %v736
    %v1301 = vpack.c.bf16 %v1236, %v1236
    %v1302 = vpack.c.bf16 %v1238, %v1238
    %v1304 = vsel %vm652, %v1299, 0
    %v1307 = vsel %vm312, %v1301, 0
    %1309 = vmatpush.bf16.msra.mxu0 0
    %1310 = vmatpush.bf16.msra.mxu0 0
    %1311 = vmatpush.bf16.msra.mxu0 0
    %1312 = vmatpush.bf16.msra.mxu0 0
    %1313 = vmatpush.bf16.msra.mxu0 0
    %1314 = vmatpush.bf16.msra.mxu0 0
    %1315 = vmatpush.bf16.msra.mxu0 0
    %1316 = vmatpush.bf16.msra.mxu0 %v1307
    %1317 = vmatmul.bf16.gmra.mxu0 %v1304
    %v1318 = vpop.f32.mrf.mxu0
    %v1319 = vadd.f32 0.0, %v1318
    %v1320 = vpop.f32.mrf.mxu0
    %1321 = vdwg.mxu0
    %v1323 = vsel %vm652, %v1300, 0
    %v1326 = vsel %vm312, %v1302, 0
    %1328 = vmatpush.bf16.msra.mxu0 0
    %1329 = vmatpush.bf16.msra.mxu0 0
    %1330 = vmatpush.bf16.msra.mxu0 0
    %1331 = vmatpush.bf16.msra.mxu0 0
    %1332 = vmatpush.bf16.msra.mxu0 0
    %1333 = vmatpush.bf16.msra.mxu0 0
    %1334 = vmatpush.bf16.msra.mxu0 0
    %1335 = vmatpush.bf16.msra.mxu0 %v1326
    %1336 = vmatmul.bf16.gmra.mxu0 %v1323
    %v1337 = vpop.f32.mrf.mxu0
    %v1338 = vadd.f32 0.0, %v1337
    %v1339 = vpop.f32.mrf.mxu0
    %1340 = vdwg.mxu0
    %1343 = vrot.lane.b32.xlu0 %v1319, 64
    %v1344 = vpop.permute.xlu0 %1343
    %1345 = vrot.lane.b32.xlu0 %v1338, 64
    %v1346 = vpop.permute.xlu0 %1345
    %v1349 = vmul.f32 %v230, %v1344
    %v1350 = vmul.f32 %v231, %v1346
    %vm1351 = vcmask 785920
    %v1352 = vsel %vm1351, %v1349, 0.0
    %v1353 = vrot.slane %v1352, 4
    %v1354 = vadd.f32 %v1352, %v1353
    %v1355 = vrot.slane %v1354, 2
    %v1356 = vadd.f32 %v1354, %v1355
    %v1357 = vrot.slane %v1356, 1
    %v1358 = vadd.f32 %v1356, %v1357
    %v1359 = vsel %vm1351, %v1350, 0.0
    %v1360 = vrot.slane %v1359, 4
    %v1361 = vadd.f32 %v1359, %v1360
    %v1362 = vrot.slane %v1361, 2
    %v1363 = vadd.f32 %v1361, %v1362
    %v1364 = vrot.slane %v1363, 1
    %v1365 = vadd.f32 %v1363, %v1364
    %v1366 = vpack.c.bf16 %v1291, %v1291
    %v1367 = vpack.c.bf16 %v1298, %v1298
    %v1368 = vld [vmem:[%s17] sm:$0xf]
    %v1369 = vld [vmem:[%s17 + $0x4] sm:$0xf]
    %v1370 = vld [vmem:[%s17 + $0x8] sm:$0xf]
    %v1371 = vld [vmem:[%s17 + $0xc] sm:$0xf]
    %v1372 = vld [vmem:[%s18] sm:$0x1]
    %v1374 = vperm.slane %v1372, 0
    %v1378 = vunpack.c.l.b16 %v1366
    %v1379 = vunpack.c.l.b16 %v1367
    %vm1380 = vcmask 1041409
    %v1381 = vsel %vm1380, %v1379, %v1378
    %v1382 = vpack.c.b16 %v1381, %v1381
    %v1387 = vunpack.c.l.b16 %v1368
    %v1388 = vunpack.c.l.b16 %v1369
    %v1389 = vunpack.c.l.b16 %v1370
    %v1390 = vunpack.c.l.b16 %v1371
    %v1391 = vpack.c.b16 %v1388, %v1387
    %v1392 = vpack.c.b16 %v1390, %v1389
    %v1396 = vsel %vm196, %v1382, 0
    %1398 = vmatpush.bf16.msra.mxu0 0
    %1399 = vmatpush.bf16.msra.mxu0 0
    %1400 = vmatpush.bf16.msra.mxu0 0
    %1401 = vmatpush.bf16.msra.mxu0 0
    %1402 = vmatpush.bf16.msra.mxu0 0
    %1403 = vmatpush.bf16.msra.mxu0 0
    %1404 = vmatpush.bf16.msra.mxu0 %v1392
    %1405 = vmatpush.bf16.msra.mxu0 %v1391
    %1406 = vmatmul.bf16.gmra.mxu0 %v1396
    %v1407 = vpop.f32.mrf.mxu0
    %v1408 = vadd.f32 %v1374, %v1407
    %v1409 = vpop.f32.mrf.mxu0
    %1410 = vdwg.mxu0
    %v1411 = vpack.c.bf16 %v1358, %v1358
    %v1412 = vpack.c.bf16 %v1365, %v1365
    %v1413 = vld [vmem:[%s19] sm:$0xf]
    %v1414 = vld [vmem:[%s19 + $0x4] sm:$0xf]
    %v1415 = vld [vmem:[%s19 + $0x8] sm:$0xf]
    %v1416 = vld [vmem:[%s19 + $0xc] sm:$0xf]
    %v1417 = vld [vmem:[%s20] sm:$0x1]
    %v1419 = vperm.slane %v1417, 0
    %v1423 = vunpack.c.l.b16 %v1411
    %v1424 = vunpack.c.l.b16 %v1412
    %v1425 = vsel %vm1380, %v1424, %v1423
    %v1426 = vpack.c.b16 %v1425, %v1425
    %1427 = vrot.lane.b32.xlu0 %v1426, 64
    %v1428 = vpop.permute.xlu0 %1427
    %v1433 = vunpack.c.l.b16 %v1413
    %v1434 = vunpack.c.l.b16 %v1414
    %v1435 = vunpack.c.l.b16 %v1415
    %v1436 = vunpack.c.l.b16 %v1416
    %v1437 = vpack.c.b16 %v1434, %v1433
    %v1438 = vpack.c.b16 %v1436, %v1435
    %v1442 = vsel %vm196, %v1428, 0
    %1444 = vmatpush.bf16.msra.mxu0 0
    %1445 = vmatpush.bf16.msra.mxu0 0
    %1446 = vmatpush.bf16.msra.mxu0 0
    %1447 = vmatpush.bf16.msra.mxu0 0
    %1448 = vmatpush.bf16.msra.mxu0 0
    %1449 = vmatpush.bf16.msra.mxu0 0
    %1450 = vmatpush.bf16.msra.mxu0 %v1438
    %1451 = vmatpush.bf16.msra.mxu0 %v1437
    %1452 = vmatmul.bf16.gmra.mxu0 %v1442
    %v1453 = vpop.f32.mrf.mxu0
    %v1454 = vadd.f32 %v1419, %v1453
    %v1455 = vpop.f32.mrf.mxu0
    %1456 = vdwg.mxu0
    %v1458 = vrot.slane %v1408, 1
    %v1459 = vperm.slane %v1408, 0
    %v1460 = vperm.slane %v1458, 0
    %v1463 = vadd.f32 %v121, %v1459
    %v1464 = vadd.f32 %v122, %v1460
    %v1466 = vrot.slane %v158, 4
    %v1469 = vrot.slane %v1454, 1
    %v1470 = vperm.slane %v1454, 0
    %v1471 = vperm.slane %v1469, 0
    %v1474 = vadd.f32 %v158, %v1470
    %v1475 = vadd.f32 %v1466, %v1471
    %v1476 = vpack.c.bf16 %v1464, %v1463
    %s1477 = scalar_lea.vmem %s13, 16
    %v1478 = vld [vmem:[%s1477] sm:$0xf]
    %v1479 = vld [vmem:[%s1477 + $0x4] sm:$0xf]
    %v1480 = vld [vmem:[%s1477 + $0x8] sm:$0xf]
    %v1481 = vld [vmem:[%s1477 + $0xc] sm:$0xf]
    %s1482 = scalar_lea.vmem %s14, 1
    %v1483 = vld [vmem:[%s1482] sm:$0x1]
    %v1485 = vperm.slane %v1483, 0
    %v1491 = vunpack.c.l.b16 %v1478
    %v1492 = vunpack.c.l.b16 %v1479
    %v1493 = vunpack.c.l.b16 %v1480
    %v1494 = vunpack.c.l.b16 %v1481
    %v1495 = vpack.c.b16 %v1492, %v1491
    %v1496 = vpack.c.b16 %v1494, %v1493
    %v1500 = vsel %vm196, %v1476, 0
    %1502 = vmatpush.bf16.msra.mxu0 0
    %1503 = vmatpush.bf16.msra.mxu0 0
    %1504 = vmatpush.bf16.msra.mxu0 0
    %1505 = vmatpush.bf16.msra.mxu0 0
    %1506 = vmatpush.bf16.msra.mxu0 0
    %1507 = vmatpush.bf16.msra.mxu0 0
    %1508 = vmatpush.bf16.msra.mxu0 %v1496
    %1509 = vmatpush.bf16.msra.mxu0 %v1495
    %1510 = vmatmul.bf16.gmra.mxu0 %v1500
    %v1511 = vpop.f32.mrf.mxu0
    %v1512 = vadd.f32 %v1485, %v1511
    %v1513 = vpop.f32.mrf.mxu0
    %v1514 = vadd.f32 %v1485, %v1513
    %1515 = vdwg.mxu0
    %v1516 = vmax.f32 %v1512, 0.0
    %v1517 = vmax.f32 %v1514, 0.0
    %1520 = vst [vmem:[#allocation1] ss:$2 sm:$0xff] %v1474
    %s1521 = scalar_lea.vmem [#allocation1], 1
    %1522 = vst [vmem:[%s1521] ss:$2 sm:$0xff] %v1475
    %v1523 = vld.sshfl [vmem:[#allocation1] sm:$0xff pattern:$0x75316420]
    %v1525 = vpack.c.bf16 %v1523, %v1523
    %s1526 = scalar_lea.vmem %s15, 16
    %v1527 = vld [vmem:[%s1526] sm:$0xf]
    %v1528 = vld [vmem:[%s1526 + $0x4] sm:$0xf]
    %v1529 = vld [vmem:[%s1526 + $0x8] sm:$0xf]
    %v1530 = vld [vmem:[%s1526 + $0xc] sm:$0xf]
    %s1531 = scalar_lea.vmem %s16, 1
    %v1532 = vld [vmem:[%s1531] sm:$0x1]
    %v1534 = vperm.slane %v1532, 0
    %v1540 = vunpack.c.l.b16 %v1527
    %v1541 = vunpack.c.l.b16 %v1528
    %v1542 = vunpack.c.l.b16 %v1529
    %v1543 = vunpack.c.l.b16 %v1530
    %v1544 = vpack.c.b16 %v1541, %v1540
    %v1545 = vpack.c.b16 %v1543, %v1542
    %v1549 = vsel %vm196, %v1525, 0
    %1551 = vmatpush.bf16.msra.mxu0 0
    %1552 = vmatpush.bf16.msra.mxu0 0
    %1553 = vmatpush.bf16.msra.mxu0 0
    %1554 = vmatpush.bf16.msra.mxu0 0
    %1555 = vmatpush.bf16.msra.mxu0 0
    %1556 = vmatpush.bf16.msra.mxu0 0
    %1557 = vmatpush.bf16.msra.mxu0 %v1545
    %1558 = vmatpush.bf16.msra.mxu0 %v1544
    %1559 = vmatmul.bf16.gmra.mxu0 %v1549
    %v1560 = vpop.f32.mrf.mxu0
    %v1561 = vadd.f32 %v1534, %v1560
    %v1562 = vpop.f32.mrf.mxu0
    %1563 = vdwg.mxu0
    %v1564 = vmax.f32 %v1561, 0.0
    %v1566 = vrot.slane %v1564, 4
    %v1568 = vpack.c.bf16 %v998, %v998
    %v1569 = vpack.c.bf16 %v1000, %v1000
    %v1570 = vpack.c.bf16 %v1516, %v1516
    %v1571 = vpack.c.bf16 %v1517, %v1517
    %v1573 = vsel %vm486, %v1568, 0
    %v1576 = vsel %vm1247, %v1570, 0
    %1578 = vmatpush.bf16.msra.mxu0 0
    %1579 = vmatpush.bf16.msra.mxu0 0
    %1580 = vmatpush.bf16.msra.mxu0 0
    %1581 = vmatpush.bf16.msra.mxu0 0
    %1582 = vmatpush.bf16.msra.mxu0 0
    %1583 = vmatpush.bf16.msra.mxu0 0
    %1584 = vmatpush.bf16.msra.mxu0 0
    %1585 = vmatpush.bf16.msra.mxu0 %v1576
    %1586 = vmatmul.bf16.gmra.mxu0 %v1573
    %v1587 = vpop.f32.mrf.mxu0
    %v1588 = vadd.f32 0.0, %v1587
    %v1589 = vpop.f32.mrf.mxu0
    %1590 = vdwg.mxu0
    %v1592 = vsel %vm486, %v1569, 0
    %v1595 = vsel %vm1247, %v1571, 0
    %1597 = vmatpush.bf16.msra.mxu0 0
    %1598 = vmatpush.bf16.msra.mxu0 0
    %1599 = vmatpush.bf16.msra.mxu0 0
    %1600 = vmatpush.bf16.msra.mxu0 0
    %1601 = vmatpush.bf16.msra.mxu0 0
    %1602 = vmatpush.bf16.msra.mxu0 0
    %1603 = vmatpush.bf16.msra.mxu0 0
    %1604 = vmatpush.bf16.msra.mxu0 %v1595
    %1605 = vmatmul.bf16.gmra.mxu0 %v1592
    %v1606 = vpop.f32.mrf.mxu0
    %v1607 = vadd.f32 0.0, %v1606
    %v1608 = vpop.f32.mrf.mxu0
    %1609 = vdwg.mxu0
    %1612 = vrot.lane.b32.xlu0 %v1588, 32
    %v1613 = vpop.permute.xlu0 %1612
    %1614 = vrot.lane.b32.xlu0 %v1607, 32
    %v1615 = vpop.permute.xlu0 %1614
    %v1618 = vmul.f32 %v230, %v1613
    %v1619 = vmul.f32 %v231, %v1615
    %vm1620 = vcmask 523520
    %v1621 = vsel %vm1620, %v1618, 0.0
    %v1622 = vrot.slane %v1621, 4
    %v1623 = vadd.f32 %v1621, %v1622
    %v1624 = vrot.slane %v1623, 2
    %v1625 = vadd.f32 %v1623, %v1624
    %v1626 = vrot.slane %v1625, 1
    %v1627 = vadd.f32 %v1625, %v1626
    %v1628 = vsel %vm1620, %v1619, 0.0
    %v1629 = vrot.slane %v1628, 4
    %v1630 = vadd.f32 %v1628, %v1629
    %v1631 = vrot.slane %v1630, 2
    %v1632 = vadd.f32 %v1630, %v1631
    %v1633 = vrot.slane %v1632, 1
    %v1634 = vadd.f32 %v1632, %v1633
    %v1635 = vpack.c.bf16 %v1158, %v1158
    %v1636 = vpack.c.bf16 %v1160, %v1160
    %v1637 = vpack.c.bf16 %v1564, %v1564
    %v1638 = vpack.c.bf16 %v1566, %v1566
    %v1640 = vsel %vm652, %v1635, 0
    %v1643 = vsel %vm312, %v1637, 0
    %1645 = vmatpush.bf16.msra.mxu0 0
    %1646 = vmatpush.bf16.msra.mxu0 0
    %1647 = vmatpush.bf16.msra.mxu0 0
    %1648 = vmatpush.bf16.msra.mxu0 0
    %1649 = vmatpush.bf16.msra.mxu0 0
    %1650 = vmatpush.bf16.msra.mxu0 0
    %1651 = vmatpush.bf16.msra.mxu0 0
    %1652 = vmatpush.bf16.msra.mxu0 %v1643
    %1653 = vmatmul.bf16.gmra.mxu0 %v1640
    %v1654 = vpop.f32.mrf.mxu0
    %v1655 = vadd.f32 0.0, %v1654
    %v1656 = vpop.f32.mrf.mxu0
    %1657 = vdwg.mxu0
    %v1659 = vsel %vm652, %v1636, 0
    %v1662 = vsel %vm312, %v1638, 0
    %1664 = vmatpush.bf16.msra.mxu0 0
    %1665 = vmatpush.bf16.msra.mxu0 0
    %1666 = vmatpush.bf16.msra.mxu0 0
    %1667 = vmatpush.bf16.msra.mxu0 0
    %1668 = vmatpush.bf16.msra.mxu0 0
    %1669 = vmatpush.bf16.msra.mxu0 0
    %1670 = vmatpush.bf16.msra.mxu0 0
    %1671 = vmatpush.bf16.msra.mxu0 %v1662
    %1672 = vmatmul.bf16.gmra.mxu0 %v1659
    %v1673 = vpop.f32.mrf.mxu0
    %v1674 = vadd.f32 0.0, %v1673
    %v1675 = vpop.f32.mrf.mxu0
    %1676 = vdwg.mxu0
    %1679 = vrot.lane.b32.xlu0 %v1655, 96
    %v1680 = vpop.permute.xlu0 %1679
    %1681 = vrot.lane.b32.xlu0 %v1674, 96
    %v1682 = vpop.permute.xlu0 %1681
    %v1685 = vmul.f32 %v230, %v1680
    %v1686 = vmul.f32 %v231, %v1682
    %vm1687 = vcmask 1048320
    %v1688 = vsel %vm1687, %v1685, 0.0
    %v1689 = vrot.slane %v1688, 4
    %v1690 = vadd.f32 %v1688, %v1689
    %v1691 = vrot.slane %v1690, 2
    %v1692 = vadd.f32 %v1690, %v1691
    %v1693 = vrot.slane %v1692, 1
    %v1694 = vadd.f32 %v1692, %v1693
    %v1695 = vsel %vm1687, %v1686, 0.0
    %v1696 = vrot.slane %v1695, 4
    %v1697 = vadd.f32 %v1695, %v1696
    %v1698 = vrot.slane %v1697, 2
    %v1699 = vadd.f32 %v1697, %v1698
    %v1700 = vrot.slane %v1699, 1
    %v1701 = vadd.f32 %v1699, %v1700
    %v1702 = vpack.c.bf16 %v1627, %v1627
    %v1703 = vpack.c.bf16 %v1634, %v1634
    %s1704 = scalar_lea.vmem %s17, 16
    %v1705 = vld [vmem:[%s1704] sm:$0xf]
    %v1706 = vld [vmem:[%s1704 + $0x4] sm:$0xf]
    %v1707 = vld [vmem:[%s1704 + $0x8] sm:$0xf]
    %v1708 = vld [vmem:[%s1704 + $0xc] sm:$0xf]
    %s1709 = scalar_lea.vmem %s18, 1
    %v1710 = vld [vmem:[%s1709] sm:$0x1]
    %v1712 = vperm.slane %v1710, 0
    %v1716 = vunpack.c.l.b16 %v1702
    %v1717 = vunpack.c.l.b16 %v1703
    %v1718 = vsel %vm1380, %v1717, %v1716
    %v1719 = vpack.c.b16 %v1718, %v1718
    %1720 = vrot.lane.b32.xlu0 %v1719, 96
    %v1721 = vpop.permute.xlu0 %1720
    %v1726 = vunpack.c.l.b16 %v1705
    %v1727 = vunpack.c.l.b16 %v1706
    %v1728 = vunpack.c.l.b16 %v1707
    %v1729 = vunpack.c.l.b16 %v1708
    %v1730 = vpack.c.b16 %v1727, %v1726
    %v1731 = vpack.c.b16 %v1729, %v1728
    %v1735 = vsel %vm196, %v1721, 0
    %1737 = vmatpush.bf16.msra.mxu0 0
    %1738 = vmatpush.bf16.msra.mxu0 0
    %1739 = vmatpush.bf16.msra.mxu0 0
    %1740 = vmatpush.bf16.msra.mxu0 0
    %1741 = vmatpush.bf16.msra.mxu0 0
    %1742 = vmatpush.bf16.msra.mxu0 0
    %1743 = vmatpush.bf16.msra.mxu0 %v1731
    %1744 = vmatpush.bf16.msra.mxu0 %v1730
    %1745 = vmatmul.bf16.gmra.mxu0 %v1735
    %v1746 = vpop.f32.mrf.mxu0
    %v1747 = vadd.f32 %v1712, %v1746
    %v1748 = vpop.f32.mrf.mxu0
    %1749 = vdwg.mxu0
    %v1750 = vpack.c.bf16 %v1694, %v1694
    %v1751 = vpack.c.bf16 %v1701, %v1701
    %s1752 = scalar_lea.vmem %s19, 16
    %v1753 = vld [vmem:[%s1752] sm:$0xf]
    %v1754 = vld [vmem:[%s1752 + $0x4] sm:$0xf]
    %v1755 = vld [vmem:[%s1752 + $0x8] sm:$0xf]
    %v1756 = vld [vmem:[%s1752 + $0xc] sm:$0xf]
    %s1757 = scalar_lea.vmem %s20, 1
    %v1758 = vld [vmem:[%s1757] sm:$0x1]
    %v1760 = vperm.slane %v1758, 0
    %v1764 = vunpack.c.l.b16 %v1750
    %v1765 = vunpack.c.l.b16 %v1751
    %v1766 = vsel %vm1380, %v1765, %v1764
    %v1767 = vpack.c.b16 %v1766, %v1766
    %1768 = vrot.lane.b32.xlu0 %v1767, 32
    %v1769 = vpop.permute.xlu0 %1768
    %v1774 = vunpack.c.l.b16 %v1753
    %v1775 = vunpack.c.l.b16 %v1754
    %v1776 = vunpack.c.l.b16 %v1755
    %v1777 = vunpack.c.l.b16 %v1756
    %v1778 = vpack.c.b16 %v1775, %v1774
    %v1779 = vpack.c.b16 %v1777, %v1776
    %v1783 = vsel %vm196, %v1769, 0
    %1785 = vmatpush.bf16.msra.mxu0 0
    %1786 = vmatpush.bf16.msra.mxu0 0
    %1787 = vmatpush.bf16.msra.mxu0 0
    %1788 = vmatpush.bf16.msra.mxu0 0
    %1789 = vmatpush.bf16.msra.mxu0 0
    %1790 = vmatpush.bf16.msra.mxu0 0
    %1791 = vmatpush.bf16.msra.mxu0 %v1779
    %1792 = vmatpush.bf16.msra.mxu0 %v1778
    %1793 = vmatmul.bf16.gmra.mxu0 %v1783
    %v1794 = vpop.f32.mrf.mxu0
    %v1795 = vadd.f32 %v1760, %v1794
    %v1796 = vpop.f32.mrf.mxu0
    %1797 = vdwg.mxu0
    %v1799 = vrot.slane %v1747, 1
    %v1800 = vperm.slane %v1747, 0
    %v1801 = vperm.slane %v1799, 0
    %v1804 = vadd.f32 %v1463, %v1800
    %v1805 = vadd.f32 %v1464, %v1801
    %v1807 = vrot.slane %v1795, 1
    %v1808 = vperm.slane %v1795, 0
    %v1809 = vperm.slane %v1807, 0
    %v1812 = vadd.f32 %v1474, %v1808
    %v1813 = vadd.f32 %v1475, %v1809
    %v1814 = vsel %vm196, %v1804, 0.0
    %v1815 = vrot.slane %v1814, 4
    %v1816 = vadd.f32 %v1814, %v1815
    %v1817 = vrot.slane %v1816, 2
    %v1818 = vadd.f32 %v1816, %v1817
    %v1819 = vrot.slane %v1818, 1
    %v1820 = vadd.f32 %v1818, %v1819
    %v1821 = vsel %vm196, %v1805, 0.0
    %v1822 = vrot.slane %v1821, 4
    %v1823 = vadd.f32 %v1821, %v1822
    %v1824 = vrot.slane %v1823, 2
    %v1825 = vadd.f32 %v1823, %v1824
    %v1826 = vrot.slane %v1825, 1
    %v1827 = vadd.f32 %v1825, %v1826
    %vm1828 = vcmask 257024
    %v1829 = vsel %vm1828, %v1812, 0.0
    %v1830 = vrot.slane %v1829, 4
    %v1831 = vadd.f32 %v1829, %v1830
    %v1832 = vrot.slane %v1831, 2
    %v1833 = vadd.f32 %v1831, %v1832
    %v1834 = vrot.slane %v1833, 1
    %v1835 = vadd.f32 %v1833, %v1834
    %v1836 = vsel %vm1828, %v1813, 0.0
    %v1837 = vrot.slane %v1836, 4
    %v1838 = vadd.f32 %v1836, %v1837
    %v1839 = vrot.slane %v1838, 2
    %v1840 = vadd.f32 %v1838, %v1839
    %v1841 = vrot.slane %v1840, 1
    %v1842 = vadd.f32 %v1840, %v1841
    %v1843 = vadd.f32 %v1820, %v1835
    %v1844 = vadd.f32 %v1827, %v1842
    %v1845 = vpack.c.bf16 %v1843, %v1843
    %v1846 = vpack.c.bf16 %v1844, %v1844
    %v1847 = vld [vmem:[%s21] sm:$0xf]
    %v1848 = vld [vmem:[%s21 + $0x4] sm:$0xf]
    %v1849 = vld [vmem:[%s21 + $0x8] sm:$0xf]
    %v1850 = vld [vmem:[%s21 + $0xc] sm:$0xf]
    %v1851 = vld [vmem:[%s22] sm:$0x1]
    %v1853 = vperm.slane %v1851, 0
    %v1857 = vunpack.c.l.b16 %v1845
    %v1858 = vunpack.c.l.b16 %v1846
    %v1859 = vsel %vm1380, %v1858, %v1857
    %v1860 = vpack.c.b16 %v1859, %v1859
    %v1865 = vunpack.c.l.b16 %v1847
    %v1866 = vunpack.c.l.b16 %v1848
    %v1867 = vunpack.c.l.b16 %v1849
    %v1868 = vunpack.c.l.b16 %v1850
    %v1869 = vpack.c.b16 %v1866, %v1865
    %v1870 = vpack.c.b16 %v1868, %v1867
    %v1874 = vsel %vm196, %v1860, 0
    %1876 = vmatpush.bf16.msra.mxu0 0
    %1877 = vmatpush.bf16.msra.mxu0 0
    %1878 = vmatpush.bf16.msra.mxu0 0
    %1879 = vmatpush.bf16.msra.mxu0 0
    %1880 = vmatpush.bf16.msra.mxu0 0
    %1881 = vmatpush.bf16.msra.mxu0 0
    %1882 = vmatpush.bf16.msra.mxu0 %v1870
    %1883 = vmatpush.bf16.msra.mxu0 %v1869
    %1884 = vmatmul.bf16.gmra.mxu0 %v1874
    %v1885 = vpop.f32.mrf.mxu0
    %v1886 = vadd.f32 %v1853, %v1885
    %v1887 = vpop.f32.mrf.mxu0
    %1888 = vdwg.mxu0
    %v1889 = vmax.f32 %v1886, 0.0
    %v1890 = vpack.c.bf16 %v1889, %v1889
    %v1891 = vld [vmem:[%s23] sm:$0xf]
    %v1892 = vld [vmem:[%s23 + $0x4] sm:$0xf]
    %v1893 = vld [vmem:[%s23 + $0x8] sm:$0xf]
    %v1894 = vld [vmem:[%s23 + $0xc] sm:$0xf]
    %v1895 = vld [vmem:[%s23 + $0x10] sm:$0xf]
    %v1896 = vld [vmem:[%s23 + $0x14] sm:$0xf]
    %v1897 = vld [vmem:[%s23 + $0x18] sm:$0xf]
    %v1898 = vld [vmem:[%s23 + $0x1c] sm:$0xf]
    %v1899 = vld [vmem:[%s24] sm:$0x1]
    %v1901 = vperm.slane %v1899, 0
    %v1911 = vunpack.c.l.b16 %v1891
    %v1912 = vunpack.c.l.b16 %v1892
    %v1913 = vunpack.c.l.b16 %v1893
    %v1914 = vunpack.c.l.b16 %v1894
    %v1915 = vunpack.c.l.b16 %v1895
    %v1916 = vunpack.c.l.b16 %v1896
    %v1917 = vunpack.c.l.b16 %v1897
    %v1918 = vunpack.c.l.b16 %v1898
    %v1919 = vpack.c.b16 %v1912, %v1911
    %v1920 = vpack.c.b16 %v1914, %v1913
    %v1921 = vpack.c.b16 %v1916, %v1915
    %v1922 = vpack.c.b16 %v1918, %v1917
    %v1928 = vsel %vm1164, %v1890, 0
    %1930 = vmatpush.bf16.msra.mxu0 0
    %1931 = vmatpush.bf16.msra.mxu0 0
    %1932 = vmatpush.bf16.msra.mxu0 0
    %1933 = vmatpush.bf16.msra.mxu0 0
    %1934 = vmatpush.bf16.msra.mxu0 %v1922
    %1935 = vmatpush.bf16.msra.mxu0 %v1921
    %1936 = vmatpush.bf16.msra.mxu0 %v1920
    %1937 = vmatpush.bf16.msra.mxu0 %v1919
    %1938 = vmatmul.bf16.gmra.mxu0 %v1928
    %v1939 = vpop.f32.mrf.mxu0
    %v1940 = vadd.f32 %v1901, %v1939
    %v1941 = vpop.f32.mrf.mxu0
    %1942 = vdwg.mxu0
    %1943 = vst [vmem:[#allocation2] sm:$0x3] %v1940
    // Predicated region
    $region102: #{ban_forward.1} parent=1 // pred_check
      _
    $region103: #{ban_forward.1} parent=1 // pred_check_branch
      %1945 = sbr.rel (0) target = $region105
    $region104: #{ban_forward.1} parent=1 // pred_region
      %1947 = vsyncadd [#allocation3], 0
      %s1949 = sshll.u32 [#allocation2], 4
      %s1950 = int_to_ptr.vmem [resolvable:$true] %s1949
      %s1951 = sshll.u32 %s25, 4
      %s1952 = int_to_ptr.hbm [resolvable:$true] %s1951
      %1954 = dma.vmem_to_hbm [thread:$0]  %s1950, 32, %s1952, [#allocation3]
    $region105: #{ban_forward.1} parent=1 // pred_fallthru
      _
    // Predicated region
    $region106: #{ban_forward.1} parent=1 // pred_check
      _
    $region107: #{ban_forward.1} parent=1 // pred_check_branch
      %1956 = sbr.rel (0) target = $region109
    $region108: #{ban_forward.1} parent=1 // pred_region
      _
    $region109: #{ban_forward.1} parent=1 // pred_fallthru
      _
    // Predicated region
    $region110: #{ban_forward.1} parent=1 // pred_check
      _
    $region111: #{ban_forward.1} parent=1 // pred_check_branch
      %1958 = sbr.rel (0) target = $region113
    $region112: #{ban_forward.1} parent=1 // pred_region
      %1960 = dma.done [#allocation3], 32
    $region113: #{ban_forward.1} parent=1 // pred_fallthru
      _
    // Predicated region
    $region114: #{ban_forward.1} parent=1 // pred_check
      _
    $region115: #{ban_forward.1} parent=1 // pred_check_branch
      %1962 = sbr.rel (0) target = $region117
    $region116: #{ban_forward.1} parent=1 // pred_region
      _
    $region117: #{ban_forward.1} parent=1 // pred_fallthru
      _
    %1963 = vsyncpa [#allocation3], 1

</llo_original>
